<compile_context>
chip_gen: v5e
topology: v5e:2x2
jax: 0.10.0
libtpu: 0.0.40
codegen_flags: <defaults>
</compile_context>

<pallas_src>
import functools

import jax
import jax.numpy as jnp
from jax import lax
from jax.experimental import pallas as pl
from jax.experimental.pallas import tpu as pltpu


# ----------------------------------------------------------------------------
# Fused kernel: features (src+tar) + FeatureCorrelation + KNNGeometric +
# separable bilinear upsample.  One grid step per batch element.
# ----------------------------------------------------------------------------
def _pronet_kernel(p_ref, w_ref, b_ref, lbl_ref, bilh_ref, bilwT_ref, out_ref,
                   *, K, hw, h, w, H, W, nc):
    # ---- feature extraction: src & tar patches stacked on the M dimension ----
    # (2*hw, P) bf16 @ (P, Cf) bf16 -> f32 acc, ReLU, channel-wise L2 normalize.
    f = jnp.dot(p_ref[0], w_ref[...], preferred_element_type=jnp.float32)
    f = jnp.maximum(f + b_ref[...], 0.0)
    ss = jnp.sum(f * f, axis=-1, keepdims=True)
    # F.normalize(p=2, dim=channel, eps=1e-12): rsqrt keeps the divide off the
    # VALU (EUP slot); elementwise math stays f32 (v5e has no bf16 VPU path).
    f = f * lax.rsqrt(jnp.maximum(ss, 1e-24))
    fb = f.astype(jnp.bfloat16)
    feat_src = fb[:hw]                       # (hw, Cf)
    feat_tar = fb[hw:]                       # (hw, Cf)

    # ---- FeatureCorrelation: corr[i, j] = <src_i, tar_j> (i=src pos, j=tar pos)
    corr = lax.dot_general(feat_src, feat_tar, (((1,), (1,)), ((), ())),
                           preferred_element_type=jnp.float32)     # (hw, hw) f32

    # ---- KNNGeometric: iterative top-K over the source axis per target pixel.
    # Accumulate a (hw_src, hw_tar) gather-weight matrix; the label matmul is
    # hoisted out of the K loop (done once afterwards).
    iota_src = lax.broadcasted_iota(jnp.int32, (hw, 1), 0)   # column iota
    corr_m = corr
    wgt = jnp.zeros((hw, hw), jnp.float32)
    for _ in range(K):                                       # K static & small
        v = jnp.max(corr_m, axis=0, keepdims=True)           # (1, hw) best corr
        idx = jnp.min(jnp.where(corr_m == v, iota_src, hw),
                      axis=0, keepdims=True)                 # (1, hw) argmax idx
        onehot = (iota_src == idx).astype(jnp.float32)       # (hw, hw)
        wgt = wgt + onehot * v                               # weight = correlation
        corr_m = corr_m - onehot * 1e9                       # mask (finite, no NaN)

    # tar_pred[c, j] = sum_k lbl[c, topk_k(j)] * corr[topk_k(j), j]
    pred = jnp.dot(lbl_ref[0].astype(jnp.bfloat16), wgt.astype(jnp.bfloat16),
                   preferred_element_type=jnp.float32)        # (nc, h*w)

    # ---- F.interpolate(..., mode='bilinear', align_corners=False), separable:
    # width: per-row-block MXU matmuls on w-column slices of pred;
    # height: rank-1 (H,1)x(1,W) broadcast accumulation on the VPU.
    bilh = bilh_ref[...]                      # (H, h) f32  (VPU operand)
    bilwT = bilwT_ref[...]                    # (w, W) bf16 (MXU operand)
    q = [jnp.dot(pred[:, i * w:(i + 1) * w].astype(jnp.bfloat16), bilwT,
                 preferred_element_type=jnp.float32)          # (nc, W)
         for i in range(h)]
    for c in range(nc):                                       # nc static & small
        acc = jnp.zeros((H, W), jnp.float32)
        for i in range(h):
            acc = acc + bilh[:, i:i + 1] * q[i][c:c + 1, :]
        out_ref[0, c] = acc


# ----------------------------------------------------------------------------
# Plain-JAX glue (patchify, nearest label resize, bilinear operator build)
# ----------------------------------------------------------------------------
def patchify(x, s):
    """NCHW image -> (B, h*w, C*s*s) non-overlapping patches."""
    B, C, Hh, Ww = x.shape
    h, w = Hh // s, Ww // s
    x = x.reshape(B, C, h, s, w, s)
    x = x.transpose(0, 2, 4, 1, 3, 5)            # (B, h, w, C, s, s)
    return x.reshape(B, h * w, C * s * s)


def nearest_resize_nchw(x, out_h, out_w):
    """PyTorch F.interpolate mode='nearest' (floor(dst * in/out))."""
    in_h, in_w = x.shape[-2:]
    iy = jnp.floor(jnp.arange(out_h) * (in_h / out_h)).astype(jnp.int32)
    ix = jnp.floor(jnp.arange(out_w) * (in_w / out_w)).astype(jnp.int32)
    return x[..., iy, :][..., ix]


def bilinear_matrix(out_size, in_size):
    """1-D interpolation matrix matching PyTorch bilinear, align_corners=False."""
    scale = in_size / out_size
    o = jnp.arange(out_size, dtype=jnp.float32)
    src = jnp.clip((o + 0.5) * scale - 0.5, 0.0, in_size - 1)
    i0 = jnp.floor(src).astype(jnp.int32)
    frac = src - i0.astype(jnp.float32)
    i1 = jnp.minimum(i0 + 1, in_size - 1)
    m = jnp.zeros((out_size, in_size), jnp.float32)
    m = m.at[jnp.arange(out_size), i0].add(1.0 - frac)
    m = m.at[jnp.arange(out_size), i1].add(frac)
    return m


@functools.partial(jax.jit, static_argnums=(5, 6, 7))
def pronet_forward(src_img, tar_img, src_lbl, w_feat, b_feat, K, h, w):
    B, C_in, H, W = src_img.shape
    nc = src_lbl.shape[1]
    Cf = w_feat.shape[1]
    stride = H // h
    hw = h * w
    P = C_in * stride * stride

    # src+tar patches stacked on the row (M) dimension -> one feature matmul
    # per grid step; bf16 operands halve the input DMA.
    patches = jnp.concatenate(
        [patchify(src_img, stride), patchify(tar_img, stride)], axis=1
    ).astype(jnp.bfloat16)                                    # (B, 2*hw, P)

    # KNNGeometric: F.interpolate(src_lbl, (h, w)) default mode='nearest'.
    lbl_flat = nearest_resize_nchw(src_lbl, h, w).reshape(B, nc, hw)

    # Separable bilinear operators (align_corners=False); no kron'd matrix.
    bilh = bilinear_matrix(H, h)                              # (H, h)  f32
    bilwT = bilinear_matrix(W, w).T.astype(jnp.bfloat16)      # (w, W)  bf16

    kern = functools.partial(_pronet_kernel,
                             K=K, hw=hw, h=h, w=w, H=H, W=W, nc=nc)

    return pl.pallas_call(
        kern,
        out_shape=jax.ShapeDtypeStruct((B, nc, H, W), jnp.float32),
        grid=(B,),
        in_specs=[
            pl.BlockSpec((1, 2 * hw, P), lambda i: (i, 0, 0)),
            pl.BlockSpec((P, Cf), lambda i: (0, 0)),
            pl.BlockSpec((1, Cf), lambda i: (0, 0)),
            pl.BlockSpec((1, nc, hw), lambda i: (i, 0, 0)),
            pl.BlockSpec((H, h), lambda i: (0, 0)),
            pl.BlockSpec((w, W), lambda i: (0, 0)),
        ],
        out_specs=pl.BlockSpec((1, nc, H, W), lambda i: (i, 0, 0, 0)),
        compiler_params=pltpu.CompilerParams(
            dimension_semantics=("parallel",)),
    )(patches, w_feat.astype(jnp.bfloat16), b_feat, lbl_flat, bilh, bilwT)


if __name__ == "__main__":
    key = jax.random.PRNGKey(0)
    B, C_in, H, W = 2, 3, 32, 32          # input images (NCHW)
    stride = 4
    h, w = H // stride, W // stride       # feature map size 8 x 8
    Cf = 32                               # feature channels
    num_classes = 5
    K = 4

    k0, k1, k2, k3, k4 = jax.random.split(key, 5)
    src_img = jax.random.normal(k0, (B, C_in, H, W), jnp.float32)
    tar_img = jax.random.normal(k1, (B, C_in, H, W), jnp.float32)
    src_lbl = jax.random.uniform(k2, (B, num_classes, 16, 16), jnp.float32)

    P = C_in * stride * stride
    w_feat = jax.random.normal(k3, (P, Cf), jnp.float32) * (1.0 / jnp.sqrt(P))
    b_feat = jax.random.normal(k4, (1, Cf), jnp.float32) * 0.01

    out = pronet_forward(src_img, tar_img, src_lbl, w_feat, b_feat, K, h, w)
    out = jax.block_until_ready(out)
    assert out.shape == (B, num_classes, H, W), out.shape
    assert bool(jnp.all(jnp.isfinite(out)))
    print("KERNEL_OK")
</pallas_src>

<mosaic_0001>
module attributes {stable_mosaic.version = 11 : i64} {
  func.func @_pronet_kernel(%arg0: i32, %arg1: memref<1x128x48xbf16, #tpu.memory_space<vmem>>, %arg2: memref<48x32xbf16, #tpu.memory_space<vmem>>, %arg3: memref<1x32xf32, #tpu.memory_space<vmem>>, %arg4: memref<1x5x64xf32, #tpu.memory_space<vmem>>, %arg5: memref<32x8xf32, #tpu.memory_space<vmem>>, %arg6: memref<8x32xbf16, #tpu.memory_space<vmem>>, %arg7: memref<1x5x32x32xf32, #tpu.memory_space<vmem>>) attributes {dimension_semantics = [#tpu.dimension_semantics<parallel>], iteration_bounds = array<i64: 2>, scalar_prefetch = 0 : i64, scratch_operands = 0 : i64, tpu.core_type = #tpu.core_type<tc>, window_params = [{transform_indices = @transform_0, window_bounds = array<i64: 1, 128, 48>}, {pipeline_mode = #tpu.pipeline_mode<synchronous>, transform_indices = @transform_1, window_bounds = array<i64: 48, 32>}, {pipeline_mode = #tpu.pipeline_mode<synchronous>, transform_indices = @transform_2, window_bounds = array<i64: 1, 32>}, {transform_indices = @transform_3, window_bounds = array<i64: 1, 5, 64>}, {pipeline_mode = #tpu.pipeline_mode<synchronous>, transform_indices = @transform_4, window_bounds = array<i64: 32, 8>}, {pipeline_mode = #tpu.pipeline_mode<synchronous>, transform_indices = @transform_5, window_bounds = array<i64: 8, 32>}, {transform_indices = @transform_6, window_bounds = array<i64: 1, 5, 32, 32>}]} {
    %c0 = arith.constant 0 : index
    %c0_0 = arith.constant 0 : index
    %c0_1 = arith.constant 0 : index
    %0 = vector.load %arg1[%c0, %c0_0, %c0_1] : memref<1x128x48xbf16, #tpu.memory_space<vmem>>, vector<1x128x48xbf16>
    %1 = vector.shape_cast %0 : vector<1x128x48xbf16> to vector<128x48xbf16>
    %c0_2 = arith.constant 0 : index
    %c0_3 = arith.constant 0 : index
    %2 = vector.load %arg2[%c0_2, %c0_3] : memref<48x32xbf16, #tpu.memory_space<vmem>>, vector<48x32xbf16>
    %cst = arith.constant dense<0.000000e+00> : vector<128x32xf32>
    %3 = tpu.matmul %1, %2, %cst {dimension_numbers = #tpu.dot_dimension_numbers<[1], [0], [0], [1], [0, 0, 1, 1], [], []>} : vector<128x48xbf16>, vector<48x32xbf16>, vector<128x32xf32> -> vector<128x32xf32>
    %c0_4 = arith.constant 0 : index
    %c0_5 = arith.constant 0 : index
    %4 = vector.load %arg3[%c0_4, %c0_5] : memref<1x32xf32, #tpu.memory_space<vmem>>, vector<1x32xf32>
    %5 = vector.broadcast %4 : vector<1x32xf32> to vector<128x32xf32>
    %6 = arith.addf %3, %5 : vector<128x32xf32>
    %cst_6 = arith.constant 0.000000e+00 : f32
    %7 = vector.broadcast %cst_6 : f32 to vector<128x32xf32>
    %8 = arith.maximumf %6, %7 : vector<128x32xf32>
    %9 = arith.mulf %8, %8 : vector<128x32xf32>
    %cst_7 = arith.constant dense<0.000000e+00> : vector<128xf32>
    %10 = vector.multi_reduction <add>, %9, %cst_7 [1] : vector<128x32xf32> to vector<128xf32>
    %11 = vector.shape_cast %10 : vector<128xf32> to vector<128x1xf32>
    %cst_8 = arith.constant 1.000000e-24 : f32
    %12 = vector.broadcast %cst_8 : f32 to vector<128x1xf32>
    %13 = arith.maximumf %11, %12 : vector<128x1xf32>
    %14 = math.rsqrt %13 : vector<128x1xf32>
    %15 = vector.broadcast %14 : vector<128x1xf32> to vector<128x32xf32>
    %16 = arith.mulf %8, %15 : vector<128x32xf32>
    %17 = arith.truncf %16 : vector<128x32xf32> to vector<128x32xbf16>
    %18 = vector.extract_strided_slice %17 {offsets = [0, 0], sizes = [64, 32], strides = [1, 1]} : vector<128x32xbf16> to vector<64x32xbf16>
    %19 = vector.extract_strided_slice %17 {offsets = [64, 0], sizes = [64, 32], strides = [1, 1]} : vector<128x32xbf16> to vector<64x32xbf16>
    %cst_9 = arith.constant dense<0.000000e+00> : vector<64x64xf32>
    %20 = tpu.matmul %18, %19, %cst_9 {dimension_numbers = #tpu.dot_dimension_numbers<[1], [1], [0], [0], [0, 0, 1, 0], [], []>} : vector<64x32xbf16>, vector<64x32xbf16>, vector<64x64xf32> -> vector<64x64xf32>
    %21 = tpu.iota {dimensions = array<i32: 0>} : vector<64x1xi32>
    %cst_10 = arith.constant 0.000000e+00 : f32
    %22 = vector.broadcast %cst_10 : f32 to vector<64x64xf32>
    %cst_11 = arith.constant dense<0xFF800000> : vector<64xf32>
    %23 = vector.multi_reduction <maximumf>, %20, %cst_11 [0] : vector<64x64xf32> to vector<64xf32>
    %24 = vector.shape_cast %23 : vector<64xf32> to vector<1x64xf32>
    %25 = vector.broadcast %24 : vector<1x64xf32> to vector<64x64xf32>
    %26 = arith.cmpf oeq, %20, %25 : vector<64x64xf32>
    %c64_i32 = arith.constant 64 : i32
    %27 = vector.shape_cast %21 : vector<64x1xi32> to vector<64x1xi32>
    %28 = vector.broadcast %27 : vector<64x1xi32> to vector<64x64xi32>
    %29 = vector.broadcast %c64_i32 : i32 to vector<64x64xi32>
    %30 = arith.select %26, %28, %29 : vector<64x64xi1>, vector<64x64xi32>
    %cst_12 = arith.constant dense<2147483647> : vector<64xi32>
    %31 = vector.multi_reduction <minsi>, %30, %cst_12 [0] : vector<64x64xi32> to vector<64xi32>
    %32 = vector.shape_cast %31 : vector<64xi32> to vector<1x64xi32>
    %33 = vector.broadcast %21 : vector<64x1xi32> to vector<64x64xi32>
    %34 = vector.broadcast %32 : vector<1x64xi32> to vector<64x64xi32>
    %35 = arith.cmpi eq, %33, %34 : vector<64x64xi32>
    %36 = arith.extui %35 : vector<64x64xi1> to vector<64x64xi32>
    %37 = arith.sitofp %36 : vector<64x64xi32> to vector<64x64xf32>
    %38 = vector.broadcast %24 : vector<1x64xf32> to vector<64x64xf32>
    %39 = arith.mulf %37, %38 : vector<64x64xf32>
    %40 = arith.addf %22, %39 : vector<64x64xf32>
    %cst_13 = arith.constant 1.000000e+09 : f32
    %41 = vector.broadcast %cst_13 : f32 to vector<64x64xf32>
    %42 = arith.mulf %37, %41 : vector<64x64xf32>
    %43 = arith.subf %20, %42 : vector<64x64xf32>
    %cst_14 = arith.constant dense<0xFF800000> : vector<64xf32>
    %44 = vector.multi_reduction <maximumf>, %43, %cst_14 [0] : vector<64x64xf32> to vector<64xf32>
    %45 = vector.shape_cast %44 : vector<64xf32> to vector<1x64xf32>
    %46 = vector.broadcast %45 : vector<1x64xf32> to vector<64x64xf32>
    %47 = arith.cmpf oeq, %43, %46 : vector<64x64xf32>
    %c64_i32_15 = arith.constant 64 : i32
    %48 = vector.shape_cast %21 : vector<64x1xi32> to vector<64x1xi32>
    %49 = vector.broadcast %48 : vector<64x1xi32> to vector<64x64xi32>
    %50 = vector.broadcast %c64_i32_15 : i32 to vector<64x64xi32>
    %51 = arith.select %47, %49, %50 : vector<64x64xi1>, vector<64x64xi32>
    %cst_16 = arith.constant dense<2147483647> : vector<64xi32>
    %52 = vector.multi_reduction <minsi>, %51, %cst_16 [0] : vector<64x64xi32> to vector<64xi32>
    %53 = vector.shape_cast %52 : vector<64xi32> to vector<1x64xi32>
    %54 = vector.broadcast %21 : vector<64x1xi32> to vector<64x64xi32>
    %55 = vector.broadcast %53 : vector<1x64xi32> to vector<64x64xi32>
    %56 = arith.cmpi eq, %54, %55 : vector<64x64xi32>
    %57 = arith.extui %56 : vector<64x64xi1> to vector<64x64xi32>
    %58 = arith.sitofp %57 : vector<64x64xi32> to vector<64x64xf32>
    %59 = vector.broadcast %45 : vector<1x64xf32> to vector<64x64xf32>
    %60 = arith.mulf %58, %59 : vector<64x64xf32>
    %61 = arith.addf %40, %60 : vector<64x64xf32>
    %cst_17 = arith.constant 1.000000e+09 : f32
    %62 = vector.broadcast %cst_17 : f32 to vector<64x64xf32>
    %63 = arith.mulf %58, %62 : vector<64x64xf32>
    %64 = arith.subf %43, %63 : vector<64x64xf32>
    %cst_18 = arith.constant dense<0xFF800000> : vector<64xf32>
    %65 = vector.multi_reduction <maximumf>, %64, %cst_18 [0] : vector<64x64xf32> to vector<64xf32>
    %66 = vector.shape_cast %65 : vector<64xf32> to vector<1x64xf32>
    %67 = vector.broadcast %66 : vector<1x64xf32> to vector<64x64xf32>
    %68 = arith.cmpf oeq, %64, %67 : vector<64x64xf32>
    %c64_i32_19 = arith.constant 64 : i32
    %69 = vector.shape_cast %21 : vector<64x1xi32> to vector<64x1xi32>
    %70 = vector.broadcast %69 : vector<64x1xi32> to vector<64x64xi32>
    %71 = vector.broadcast %c64_i32_19 : i32 to vector<64x64xi32>
    %72 = arith.select %68, %70, %71 : vector<64x64xi1>, vector<64x64xi32>
    %cst_20 = arith.constant dense<2147483647> : vector<64xi32>
    %73 = vector.multi_reduction <minsi>, %72, %cst_20 [0] : vector<64x64xi32> to vector<64xi32>
    %74 = vector.shape_cast %73 : vector<64xi32> to vector<1x64xi32>
    %75 = vector.broadcast %21 : vector<64x1xi32> to vector<64x64xi32>
    %76 = vector.broadcast %74 : vector<1x64xi32> to vector<64x64xi32>
    %77 = arith.cmpi eq, %75, %76 : vector<64x64xi32>
    %78 = arith.extui %77 : vector<64x64xi1> to vector<64x64xi32>
    %79 = arith.sitofp %78 : vector<64x64xi32> to vector<64x64xf32>
    %80 = vector.broadcast %66 : vector<1x64xf32> to vector<64x64xf32>
    %81 = arith.mulf %79, %80 : vector<64x64xf32>
    %82 = arith.addf %61, %81 : vector<64x64xf32>
    %cst_21 = arith.constant 1.000000e+09 : f32
    %83 = vector.broadcast %cst_21 : f32 to vector<64x64xf32>
    %84 = arith.mulf %79, %83 : vector<64x64xf32>
    %85 = arith.subf %64, %84 : vector<64x64xf32>
    %cst_22 = arith.constant dense<0xFF800000> : vector<64xf32>
    %86 = vector.multi_reduction <maximumf>, %85, %cst_22 [0] : vector<64x64xf32> to vector<64xf32>
    %87 = vector.shape_cast %86 : vector<64xf32> to vector<1x64xf32>
    %88 = vector.broadcast %87 : vector<1x64xf32> to vector<64x64xf32>
    %89 = arith.cmpf oeq, %85, %88 : vector<64x64xf32>
    %c64_i32_23 = arith.constant 64 : i32
    %90 = vector.shape_cast %21 : vector<64x1xi32> to vector<64x1xi32>
    %91 = vector.broadcast %90 : vector<64x1xi32> to vector<64x64xi32>
    %92 = vector.broadcast %c64_i32_23 : i32 to vector<64x64xi32>
    %93 = arith.select %89, %91, %92 : vector<64x64xi1>, vector<64x64xi32>
    %cst_24 = arith.constant dense<2147483647> : vector<64xi32>
    %94 = vector.multi_reduction <minsi>, %93, %cst_24 [0] : vector<64x64xi32> to vector<64xi32>
    %95 = vector.shape_cast %94 : vector<64xi32> to vector<1x64xi32>
    %96 = vector.broadcast %21 : vector<64x1xi32> to vector<64x64xi32>
    %97 = vector.broadcast %95 : vector<1x64xi32> to vector<64x64xi32>
    %98 = arith.cmpi eq, %96, %97 : vector<64x64xi32>
    %99 = arith.extui %98 : vector<64x64xi1> to vector<64x64xi32>
    %100 = arith.sitofp %99 : vector<64x64xi32> to vector<64x64xf32>
    %101 = vector.broadcast %87 : vector<1x64xf32> to vector<64x64xf32>
    %102 = arith.mulf %100, %101 : vector<64x64xf32>
    %103 = arith.addf %82, %102 : vector<64x64xf32>
    %c0_25 = arith.constant 0 : index
    %c0_26 = arith.constant 0 : index
    %c0_27 = arith.constant 0 : index
    %104 = vector.load %arg4[%c0_25, %c0_26, %c0_27] : memref<1x5x64xf32, #tpu.memory_space<vmem>>, vector<1x5x64xf32>
    %105 = vector.shape_cast %104 : vector<1x5x64xf32> to vector<5x64xf32>
    %106 = arith.truncf %105 : vector<5x64xf32> to vector<5x64xbf16>
    %107 = arith.truncf %103 : vector<64x64xf32> to vector<64x64xbf16>
    %cst_28 = arith.constant dense<0.000000e+00> : vector<5x64xf32>
    %108 = tpu.matmul %106, %107, %cst_28 {dimension_numbers = #tpu.dot_dimension_numbers<[1], [0], [0], [1], [0, 0, 1, 1], [], []>} : vector<5x64xbf16>, vector<64x64xbf16>, vector<5x64xf32> -> vector<5x64xf32>
    %c0_29 = arith.constant 0 : index
    %c0_30 = arith.constant 0 : index
    %109 = vector.load %arg5[%c0_29, %c0_30] : memref<32x8xf32, #tpu.memory_space<vmem>>, vector<32x8xf32>
    %c0_31 = arith.constant 0 : index
    %c0_32 = arith.constant 0 : index
    %110 = vector.load %arg6[%c0_31, %c0_32] : memref<8x32xbf16, #tpu.memory_space<vmem>>, vector<8x32xbf16>
    %111 = vector.extract_strided_slice %108 {offsets = [0, 0], sizes = [5, 8], strides = [1, 1]} : vector<5x64xf32> to vector<5x8xf32>
    %112 = arith.truncf %111 : vector<5x8xf32> to vector<5x8xbf16>
    %cst_33 = arith.constant dense<0.000000e+00> : vector<5x32xf32>
    %113 = tpu.matmul %112, %110, %cst_33 {dimension_numbers = #tpu.dot_dimension_numbers<[1], [0], [0], [1], [0, 0, 1, 1], [], []>} : vector<5x8xbf16>, vector<8x32xbf16>, vector<5x32xf32> -> vector<5x32xf32>
    %114 = vector.extract_strided_slice %108 {offsets = [0, 8], sizes = [5, 8], strides = [1, 1]} : vector<5x64xf32> to vector<5x8xf32>
    %115 = arith.truncf %114 : vector<5x8xf32> to vector<5x8xbf16>
    %cst_34 = arith.constant dense<0.000000e+00> : vector<5x32xf32>
    %116 = tpu.matmul %115, %110, %cst_34 {dimension_numbers = #tpu.dot_dimension_numbers<[1], [0], [0], [1], [0, 0, 1, 1], [], []>} : vector<5x8xbf16>, vector<8x32xbf16>, vector<5x32xf32> -> vector<5x32xf32>
    %117 = vector.extract_strided_slice %108 {offsets = [0, 16], sizes = [5, 8], strides = [1, 1]} : vector<5x64xf32> to vector<5x8xf32>
    %118 = arith.truncf %117 : vector<5x8xf32> to vector<5x8xbf16>
    %cst_35 = arith.constant dense<0.000000e+00> : vector<5x32xf32>
    %119 = tpu.matmul %118, %110, %cst_35 {dimension_numbers = #tpu.dot_dimension_numbers<[1], [0], [0], [1], [0, 0, 1, 1], [], []>} : vector<5x8xbf16>, vector<8x32xbf16>, vector<5x32xf32> -> vector<5x32xf32>
    %120 = vector.extract_strided_slice %108 {offsets = [0, 24], sizes = [5, 8], strides = [1, 1]} : vector<5x64xf32> to vector<5x8xf32>
    %121 = arith.truncf %120 : vector<5x8xf32> to vector<5x8xbf16>
    %cst_36 = arith.constant dense<0.000000e+00> : vector<5x32xf32>
    %122 = tpu.matmul %121, %110, %cst_36 {dimension_numbers = #tpu.dot_dimension_numbers<[1], [0], [0], [1], [0, 0, 1, 1], [], []>} : vector<5x8xbf16>, vector<8x32xbf16>, vector<5x32xf32> -> vector<5x32xf32>
    %123 = vector.extract_strided_slice %108 {offsets = [0, 32], sizes = [5, 8], strides = [1, 1]} : vector<5x64xf32> to vector<5x8xf32>
    %124 = arith.truncf %123 : vector<5x8xf32> to vector<5x8xbf16>
    %cst_37 = arith.constant dense<0.000000e+00> : vector<5x32xf32>
    %125 = tpu.matmul %124, %110, %cst_37 {dimension_numbers = #tpu.dot_dimension_numbers<[1], [0], [0], [1], [0, 0, 1, 1], [], []>} : vector<5x8xbf16>, vector<8x32xbf16>, vector<5x32xf32> -> vector<5x32xf32>
    %126 = vector.extract_strided_slice %108 {offsets = [0, 40], sizes = [5, 8], strides = [1, 1]} : vector<5x64xf32> to vector<5x8xf32>
    %127 = arith.truncf %126 : vector<5x8xf32> to vector<5x8xbf16>
    %cst_38 = arith.constant dense<0.000000e+00> : vector<5x32xf32>
    %128 = tpu.matmul %127, %110, %cst_38 {dimension_numbers = #tpu.dot_dimension_numbers<[1], [0], [0], [1], [0, 0, 1, 1], [], []>} : vector<5x8xbf16>, vector<8x32xbf16>, vector<5x32xf32> -> vector<5x32xf32>
    %129 = vector.extract_strided_slice %108 {offsets = [0, 48], sizes = [5, 8], strides = [1, 1]} : vector<5x64xf32> to vector<5x8xf32>
    %130 = arith.truncf %129 : vector<5x8xf32> to vector<5x8xbf16>
    %cst_39 = arith.constant dense<0.000000e+00> : vector<5x32xf32>
    %131 = tpu.matmul %130, %110, %cst_39 {dimension_numbers = #tpu.dot_dimension_numbers<[1], [0], [0], [1], [0, 0, 1, 1], [], []>} : vector<5x8xbf16>, vector<8x32xbf16>, vector<5x32xf32> -> vector<5x32xf32>
    %132 = vector.extract_strided_slice %108 {offsets = [0, 56], sizes = [5, 8], strides = [1, 1]} : vector<5x64xf32> to vector<5x8xf32>
    %133 = arith.truncf %132 : vector<5x8xf32> to vector<5x8xbf16>
    %cst_40 = arith.constant dense<0.000000e+00> : vector<5x32xf32>
    %134 = tpu.matmul %133, %110, %cst_40 {dimension_numbers = #tpu.dot_dimension_numbers<[1], [0], [0], [1], [0, 0, 1, 1], [], []>} : vector<5x8xbf16>, vector<8x32xbf16>, vector<5x32xf32> -> vector<5x32xf32>
    %cst_41 = arith.constant 0.000000e+00 : f32
    %135 = vector.broadcast %cst_41 : f32 to vector<32x32xf32>
    %136 = vector.extract_strided_slice %109 {offsets = [0, 0], sizes = [32, 1], strides = [1, 1]} : vector<32x8xf32> to vector<32x1xf32>
    %137 = vector.extract_strided_slice %113 {offsets = [0, 0], sizes = [1, 32], strides = [1, 1]} : vector<5x32xf32> to vector<1x32xf32>
    %138 = vector.broadcast %136 : vector<32x1xf32> to vector<32x32xf32>
    %139 = vector.broadcast %137 : vector<1x32xf32> to vector<32x32xf32>
    %140 = arith.mulf %138, %139 : vector<32x32xf32>
    %141 = arith.addf %135, %140 : vector<32x32xf32>
    %142 = vector.extract_strided_slice %109 {offsets = [0, 1], sizes = [32, 1], strides = [1, 1]} : vector<32x8xf32> to vector<32x1xf32>
    %143 = vector.extract_strided_slice %116 {offsets = [0, 0], sizes = [1, 32], strides = [1, 1]} : vector<5x32xf32> to vector<1x32xf32>
    %144 = vector.broadcast %142 : vector<32x1xf32> to vector<32x32xf32>
    %145 = vector.broadcast %143 : vector<1x32xf32> to vector<32x32xf32>
    %146 = arith.mulf %144, %145 : vector<32x32xf32>
    %147 = arith.addf %141, %146 : vector<32x32xf32>
    %148 = vector.extract_strided_slice %109 {offsets = [0, 2], sizes = [32, 1], strides = [1, 1]} : vector<32x8xf32> to vector<32x1xf32>
    %149 = vector.extract_strided_slice %119 {offsets = [0, 0], sizes = [1, 32], strides = [1, 1]} : vector<5x32xf32> to vector<1x32xf32>
    %150 = vector.broadcast %148 : vector<32x1xf32> to vector<32x32xf32>
    %151 = vector.broadcast %149 : vector<1x32xf32> to vector<32x32xf32>
    %152 = arith.mulf %150, %151 : vector<32x32xf32>
    %153 = arith.addf %147, %152 : vector<32x32xf32>
    %154 = vector.extract_strided_slice %109 {offsets = [0, 3], sizes = [32, 1], strides = [1, 1]} : vector<32x8xf32> to vector<32x1xf32>
    %155 = vector.extract_strided_slice %122 {offsets = [0, 0], sizes = [1, 32], strides = [1, 1]} : vector<5x32xf32> to vector<1x32xf32>
    %156 = vector.broadcast %154 : vector<32x1xf32> to vector<32x32xf32>
    %157 = vector.broadcast %155 : vector<1x32xf32> to vector<32x32xf32>
    %158 = arith.mulf %156, %157 : vector<32x32xf32>
    %159 = arith.addf %153, %158 : vector<32x32xf32>
    %160 = vector.extract_strided_slice %109 {offsets = [0, 4], sizes = [32, 1], strides = [1, 1]} : vector<32x8xf32> to vector<32x1xf32>
    %161 = vector.extract_strided_slice %125 {offsets = [0, 0], sizes = [1, 32], strides = [1, 1]} : vector<5x32xf32> to vector<1x32xf32>
    %162 = vector.broadcast %160 : vector<32x1xf32> to vector<32x32xf32>
    %163 = vector.broadcast %161 : vector<1x32xf32> to vector<32x32xf32>
    %164 = arith.mulf %162, %163 : vector<32x32xf32>
    %165 = arith.addf %159, %164 : vector<32x32xf32>
    %166 = vector.extract_strided_slice %109 {offsets = [0, 5], sizes = [32, 1], strides = [1, 1]} : vector<32x8xf32> to vector<32x1xf32>
    %167 = vector.extract_strided_slice %128 {offsets = [0, 0], sizes = [1, 32], strides = [1, 1]} : vector<5x32xf32> to vector<1x32xf32>
    %168 = vector.broadcast %166 : vector<32x1xf32> to vector<32x32xf32>
    %169 = vector.broadcast %167 : vector<1x32xf32> to vector<32x32xf32>
    %170 = arith.mulf %168, %169 : vector<32x32xf32>
    %171 = arith.addf %165, %170 : vector<32x32xf32>
    %172 = vector.extract_strided_slice %109 {offsets = [0, 6], sizes = [32, 1], strides = [1, 1]} : vector<32x8xf32> to vector<32x1xf32>
    %173 = vector.extract_strided_slice %131 {offsets = [0, 0], sizes = [1, 32], strides = [1, 1]} : vector<5x32xf32> to vector<1x32xf32>
    %174 = vector.broadcast %172 : vector<32x1xf32> to vector<32x32xf32>
    %175 = vector.broadcast %173 : vector<1x32xf32> to vector<32x32xf32>
    %176 = arith.mulf %174, %175 : vector<32x32xf32>
    %177 = arith.addf %171, %176 : vector<32x32xf32>
    %178 = vector.extract_strided_slice %109 {offsets = [0, 7], sizes = [32, 1], strides = [1, 1]} : vector<32x8xf32> to vector<32x1xf32>
    %179 = vector.extract_strided_slice %134 {offsets = [0, 0], sizes = [1, 32], strides = [1, 1]} : vector<5x32xf32> to vector<1x32xf32>
    %180 = vector.broadcast %178 : vector<32x1xf32> to vector<32x32xf32>
    %181 = vector.broadcast %179 : vector<1x32xf32> to vector<32x32xf32>
    %182 = arith.mulf %180, %181 : vector<32x32xf32>
    %183 = arith.addf %177, %182 : vector<32x32xf32>
    %c0_42 = arith.constant 0 : index
    %c0_43 = arith.constant 0 : index
    %c0_44 = arith.constant 0 : index
    %c0_45 = arith.constant 0 : index
    %184 = vector.load %arg7[%c0_42, %c0_43, %c0_44, %c0_45] : memref<1x5x32x32xf32, #tpu.memory_space<vmem>>, vector<1x1x32x32xf32>
    %185 = vector.shape_cast %184 : vector<1x1x32x32xf32> to vector<32x32xf32>
    %186 = vector.shape_cast %183 : vector<32x32xf32> to vector<1x1x32x32xf32>
    tpu.vector_store %arg7[%c0_42, %c0_43, %c0_44, %c0_45], %186 {strides = array<i32>} : memref<1x5x32x32xf32, #tpu.memory_space<vmem>>, vector<1x1x32x32xf32>,
    %cst_46 = arith.constant 0.000000e+00 : f32
    %187 = vector.broadcast %cst_46 : f32 to vector<32x32xf32>
    %188 = vector.extract_strided_slice %109 {offsets = [0, 0], sizes = [32, 1], strides = [1, 1]} : vector<32x8xf32> to vector<32x1xf32>
    %189 = vector.extract_strided_slice %113 {offsets = [1, 0], sizes = [1, 32], strides = [1, 1]} : vector<5x32xf32> to vector<1x32xf32>
    %190 = vector.broadcast %188 : vector<32x1xf32> to vector<32x32xf32>
    %191 = vector.broadcast %189 : vector<1x32xf32> to vector<32x32xf32>
    %192 = arith.mulf %190, %191 : vector<32x32xf32>
    %193 = arith.addf %187, %192 : vector<32x32xf32>
    %194 = vector.extract_strided_slice %109 {offsets = [0, 1], sizes = [32, 1], strides = [1, 1]} : vector<32x8xf32> to vector<32x1xf32>
    %195 = vector.extract_strided_slice %116 {offsets = [1, 0], sizes = [1, 32], strides = [1, 1]} : vector<5x32xf32> to vector<1x32xf32>
    %196 = vector.broadcast %194 : vector<32x1xf32> to vector<32x32xf32>
    %197 = vector.broadcast %195 : vector<1x32xf32> to vector<32x32xf32>
    %198 = arith.mulf %196, %197 : vector<32x32xf32>
    %199 = arith.addf %193, %198 : vector<32x32xf32>
    %200 = vector.extract_strided_slice %109 {offsets = [0, 2], sizes = [32, 1], strides = [1, 1]} : vector<32x8xf32> to vector<32x1xf32>
    %201 = vector.extract_strided_slice %119 {offsets = [1, 0], sizes = [1, 32], strides = [1, 1]} : vector<5x32xf32> to vector<1x32xf32>
    %202 = vector.broadcast %200 : vector<32x1xf32> to vector<32x32xf32>
    %203 = vector.broadcast %201 : vector<1x32xf32> to vector<32x32xf32>
    %204 = arith.mulf %202, %203 : vector<32x32xf32>
    %205 = arith.addf %199, %204 : vector<32x32xf32>
    %206 = vector.extract_strided_slice %109 {offsets = [0, 3], sizes = [32, 1], strides = [1, 1]} : vector<32x8xf32> to vector<32x1xf32>
    %207 = vector.extract_strided_slice %122 {offsets = [1, 0], sizes = [1, 32], strides = [1, 1]} : vector<5x32xf32> to vector<1x32xf32>
    %208 = vector.broadcast %206 : vector<32x1xf32> to vector<32x32xf32>
    %209 = vector.broadcast %207 : vector<1x32xf32> to vector<32x32xf32>
    %210 = arith.mulf %208, %209 : vector<32x32xf32>
    %211 = arith.addf %205, %210 : vector<32x32xf32>
    %212 = vector.extract_strided_slice %109 {offsets = [0, 4], sizes = [32, 1], strides = [1, 1]} : vector<32x8xf32> to vector<32x1xf32>
    %213 = vector.extract_strided_slice %125 {offsets = [1, 0], sizes = [1, 32], strides = [1, 1]} : vector<5x32xf32> to vector<1x32xf32>
    %214 = vector.broadcast %212 : vector<32x1xf32> to vector<32x32xf32>
    %215 = vector.broadcast %213 : vector<1x32xf32> to vector<32x32xf32>
    %216 = arith.mulf %214, %215 : vector<32x32xf32>
    %217 = arith.addf %211, %216 : vector<32x32xf32>
    %218 = vector.extract_strided_slice %109 {offsets = [0, 5], sizes = [32, 1], strides = [1, 1]} : vector<32x8xf32> to vector<32x1xf32>
    %219 = vector.extract_strided_slice %128 {offsets = [1, 0], sizes = [1, 32], strides = [1, 1]} : vector<5x32xf32> to vector<1x32xf32>
    %220 = vector.broadcast %218 : vector<32x1xf32> to vector<32x32xf32>
    %221 = vector.broadcast %219 : vector<1x32xf32> to vector<32x32xf32>
    %222 = arith.mulf %220, %221 : vector<32x32xf32>
    %223 = arith.addf %217, %222 : vector<32x32xf32>
    %224 = vector.extract_strided_slice %109 {offsets = [0, 6], sizes = [32, 1], strides = [1, 1]} : vector<32x8xf32> to vector<32x1xf32>
    %225 = vector.extract_strided_slice %131 {offsets = [1, 0], sizes = [1, 32], strides = [1, 1]} : vector<5x32xf32> to vector<1x32xf32>
    %226 = vector.broadcast %224 : vector<32x1xf32> to vector<32x32xf32>
    %227 = vector.broadcast %225 : vector<1x32xf32> to vector<32x32xf32>
    %228 = arith.mulf %226, %227 : vector<32x32xf32>
    %229 = arith.addf %223, %228 : vector<32x32xf32>
    %230 = vector.extract_strided_slice %109 {offsets = [0, 7], sizes = [32, 1], strides = [1, 1]} : vector<32x8xf32> to vector<32x1xf32>
    %231 = vector.extract_strided_slice %134 {offsets = [1, 0], sizes = [1, 32], strides = [1, 1]} : vector<5x32xf32> to vector<1x32xf32>
    %232 = vector.broadcast %230 : vector<32x1xf32> to vector<32x32xf32>
    %233 = vector.broadcast %231 : vector<1x32xf32> to vector<32x32xf32>
    %234 = arith.mulf %232, %233 : vector<32x32xf32>
    %235 = arith.addf %229, %234 : vector<32x32xf32>
    %c0_47 = arith.constant 0 : index
    %c1 = arith.constant 1 : index
    %c0_48 = arith.constant 0 : index
    %c0_49 = arith.constant 0 : index
    %236 = vector.load %arg7[%c0_47, %c1, %c0_48, %c0_49] : memref<1x5x32x32xf32, #tpu.memory_space<vmem>>, vector<1x1x32x32xf32>
    %237 = vector.shape_cast %236 : vector<1x1x32x32xf32> to vector<32x32xf32>
    %238 = vector.shape_cast %235 : vector<32x32xf32> to vector<1x1x32x32xf32>
    tpu.vector_store %arg7[%c0_47, %c1, %c0_48, %c0_49], %238 {strides = array<i32>} : memref<1x5x32x32xf32, #tpu.memory_space<vmem>>, vector<1x1x32x32xf32>,
    %cst_50 = arith.constant 0.000000e+00 : f32
    %239 = vector.broadcast %cst_50 : f32 to vector<32x32xf32>
    %240 = vector.extract_strided_slice %109 {offsets = [0, 0], sizes = [32, 1], strides = [1, 1]} : vector<32x8xf32> to vector<32x1xf32>
    %241 = vector.extract_strided_slice %113 {offsets = [2, 0], sizes = [1, 32], strides = [1, 1]} : vector<5x32xf32> to vector<1x32xf32>
    %242 = vector.broadcast %240 : vector<32x1xf32> to vector<32x32xf32>
    %243 = vector.broadcast %241 : vector<1x32xf32> to vector<32x32xf32>
    %244 = arith.mulf %242, %243 : vector<32x32xf32>
    %245 = arith.addf %239, %244 : vector<32x32xf32>
    %246 = vector.extract_strided_slice %109 {offsets = [0, 1], sizes = [32, 1], strides = [1, 1]} : vector<32x8xf32> to vector<32x1xf32>
    %247 = vector.extract_strided_slice %116 {offsets = [2, 0], sizes = [1, 32], strides = [1, 1]} : vector<5x32xf32> to vector<1x32xf32>
    %248 = vector.broadcast %246 : vector<32x1xf32> to vector<32x32xf32>
    %249 = vector.broadcast %247 : vector<1x32xf32> to vector<32x32xf32>
    %250 = arith.mulf %248, %249 : vector<32x32xf32>
    %251 = arith.addf %245, %250 : vector<32x32xf32>
    %252 = vector.extract_strided_slice %109 {offsets = [0, 2], sizes = [32, 1], strides = [1, 1]} : vector<32x8xf32> to vector<32x1xf32>
    %253 = vector.extract_strided_slice %119 {offsets = [2, 0], sizes = [1, 32], strides = [1, 1]} : vector<5x32xf32> to vector<1x32xf32>
    %254 = vector.broadcast %252 : vector<32x1xf32> to vector<32x32xf32>
    %255 = vector.broadcast %253 : vector<1x32xf32> to vector<32x32xf32>
    %256 = arith.mulf %254, %255 : vector<32x32xf32>
    %257 = arith.addf %251, %256 : vector<32x32xf32>
    %258 = vector.extract_strided_slice %109 {offsets = [0, 3], sizes = [32, 1], strides = [1, 1]} : vector<32x8xf32> to vector<32x1xf32>
    %259 = vector.extract_strided_slice %122 {offsets = [2, 0], sizes = [1, 32], strides = [1, 1]} : vector<5x32xf32> to vector<1x32xf32>
    %260 = vector.broadcast %258 : vector<32x1xf32> to vector<32x32xf32>
    %261 = vector.broadcast %259 : vector<1x32xf32> to vector<32x32xf32>
    %262 = arith.mulf %260, %261 : vector<32x32xf32>
    %263 = arith.addf %257, %262 : vector<32x32xf32>
    %264 = vector.extract_strided_slice %109 {offsets = [0, 4], sizes = [32, 1], strides = [1, 1]} : vector<32x8xf32> to vector<32x1xf32>
    %265 = vector.extract_strided_slice %125 {offsets = [2, 0], sizes = [1, 32], strides = [1, 1]} : vector<5x32xf32> to vector<1x32xf32>
    %266 = vector.broadcast %264 : vector<32x1xf32> to vector<32x32xf32>
    %267 = vector.broadcast %265 : vector<1x32xf32> to vector<32x32xf32>
    %268 = arith.mulf %266, %267 : vector<32x32xf32>
    %269 = arith.addf %263, %268 : vector<32x32xf32>
    %270 = vector.extract_strided_slice %109 {offsets = [0, 5], sizes = [32, 1], strides = [1, 1]} : vector<32x8xf32> to vector<32x1xf32>
    %271 = vector.extract_strided_slice %128 {offsets = [2, 0], sizes = [1, 32], strides = [1, 1]} : vector<5x32xf32> to vector<1x32xf32>
    %272 = vector.broadcast %270 : vector<32x1xf32> to vector<32x32xf32>
    %273 = vector.broadcast %271 : vector<1x32xf32> to vector<32x32xf32>
    %274 = arith.mulf %272, %273 : vector<32x32xf32>
    %275 = arith.addf %269, %274 : vector<32x32xf32>
    %276 = vector.extract_strided_slice %109 {offsets = [0, 6], sizes = [32, 1], strides = [1, 1]} : vector<32x8xf32> to vector<32x1xf32>
    %277 = vector.extract_strided_slice %131 {offsets = [2, 0], sizes = [1, 32], strides = [1, 1]} : vector<5x32xf32> to vector<1x32xf32>
    %278 = vector.broadcast %276 : vector<32x1xf32> to vector<32x32xf32>
    %279 = vector.broadcast %277 : vector<1x32xf32> to vector<32x32xf32>
    %280 = arith.mulf %278, %279 : vector<32x32xf32>
    %281 = arith.addf %275, %280 : vector<32x32xf32>
    %282 = vector.extract_strided_slice %109 {offsets = [0, 7], sizes = [32, 1], strides = [1, 1]} : vector<32x8xf32> to vector<32x1xf32>
    %283 = vector.extract_strided_slice %134 {offsets = [2, 0], sizes = [1, 32], strides = [1, 1]} : vector<5x32xf32> to vector<1x32xf32>
    %284 = vector.broadcast %282 : vector<32x1xf32> to vector<32x32xf32>
    %285 = vector.broadcast %283 : vector<1x32xf32> to vector<32x32xf32>
    %286 = arith.mulf %284, %285 : vector<32x32xf32>
    %287 = arith.addf %281, %286 : vector<32x32xf32>
    %c0_51 = arith.constant 0 : index
    %c2 = arith.constant 2 : index
    %c0_52 = arith.constant 0 : index
    %c0_53 = arith.constant 0 : index
    %288 = vector.load %arg7[%c0_51, %c2, %c0_52, %c0_53] : memref<1x5x32x32xf32, #tpu.memory_space<vmem>>, vector<1x1x32x32xf32>
    %289 = vector.shape_cast %288 : vector<1x1x32x32xf32> to vector<32x32xf32>
    %290 = vector.shape_cast %287 : vector<32x32xf32> to vector<1x1x32x32xf32>
    tpu.vector_store %arg7[%c0_51, %c2, %c0_52, %c0_53], %290 {strides = array<i32>} : memref<1x5x32x32xf32, #tpu.memory_space<vmem>>, vector<1x1x32x32xf32>,
    %cst_54 = arith.constant 0.000000e+00 : f32
    %291 = vector.broadcast %cst_54 : f32 to vector<32x32xf32>
    %292 = vector.extract_strided_slice %109 {offsets = [0, 0], sizes = [32, 1], strides = [1, 1]} : vector<32x8xf32> to vector<32x1xf32>
    %293 = vector.extract_strided_slice %113 {offsets = [3, 0], sizes = [1, 32], strides = [1, 1]} : vector<5x32xf32> to vector<1x32xf32>
    %294 = vector.broadcast %292 : vector<32x1xf32> to vector<32x32xf32>
    %295 = vector.broadcast %293 : vector<1x32xf32> to vector<32x32xf32>
    %296 = arith.mulf %294, %295 : vector<32x32xf32>
    %297 = arith.addf %291, %296 : vector<32x32xf32>
    %298 = vector.extract_strided_slice %109 {offsets = [0, 1], sizes = [32, 1], strides = [1, 1]} : vector<32x8xf32> to vector<32x1xf32>
    %299 = vector.extract_strided_slice %116 {offsets = [3, 0], sizes = [1, 32], strides = [1, 1]} : vector<5x32xf32> to vector<1x32xf32>
    %300 = vector.broadcast %298 : vector<32x1xf32> to vector<32x32xf32>
    %301 = vector.broadcast %299 : vector<1x32xf32> to vector<32x32xf32>
    %302 = arith.mulf %300, %301 : vector<32x32xf32>
    %303 = arith.addf %297, %302 : vector<32x32xf32>
    %304 = vector.extract_strided_slice %109 {offsets = [0, 2], sizes = [32, 1], strides = [1, 1]} : vector<32x8xf32> to vector<32x1xf32>
    %305 = vector.extract_strided_slice %119 {offsets = [3, 0], sizes = [1, 32], strides = [1, 1]} : vector<5x32xf32> to vector<1x32xf32>
    %306 = vector.broadcast %304 : vector<32x1xf32> to vector<32x32xf32>
    %307 = vector.broadcast %305 : vector<1x32xf32> to vector<32x32xf32>
    %308 = arith.mulf %306, %307 : vector<32x32xf32>
    %309 = arith.addf %303, %308 : vector<32x32xf32>
    %310 = vector.extract_strided_slice %109 {offsets = [0, 3], sizes = [32, 1], strides = [1, 1]} : vector<32x8xf32> to vector<32x1xf32>
    %311 = vector.extract_strided_slice %122 {offsets = [3, 0], sizes = [1, 32], strides = [1, 1]} : vector<5x32xf32> to vector<1x32xf32>
    %312 = vector.broadcast %310 : vector<32x1xf32> to vector<32x32xf32>
    %313 = vector.broadcast %311 : vector<1x32xf32> to vector<32x32xf32>
    %314 = arith.mulf %312, %313 : vector<32x32xf32>
    %315 = arith.addf %309, %314 : vector<32x32xf32>
    %316 = vector.extract_strided_slice %109 {offsets = [0, 4], sizes = [32, 1], strides = [1, 1]} : vector<32x8xf32> to vector<32x1xf32>
    %317 = vector.extract_strided_slice %125 {offsets = [3, 0], sizes = [1, 32], strides = [1, 1]} : vector<5x32xf32> to vector<1x32xf32>
    %318 = vector.broadcast %316 : vector<32x1xf32> to vector<32x32xf32>
    %319 = vector.broadcast %317 : vector<1x32xf32> to vector<32x32xf32>
    %320 = arith.mulf %318, %319 : vector<32x32xf32>
    %321 = arith.addf %315, %320 : vector<32x32xf32>
    %322 = vector.extract_strided_slice %109 {offsets = [0, 5], sizes = [32, 1], strides = [1, 1]} : vector<32x8xf32> to vector<32x1xf32>
    %323 = vector.extract_strided_slice %128 {offsets = [3, 0], sizes = [1, 32], strides = [1, 1]} : vector<5x32xf32> to vector<1x32xf32>
    %324 = vector.broadcast %322 : vector<32x1xf32> to vector<32x32xf32>
    %325 = vector.broadcast %323 : vector<1x32xf32> to vector<32x32xf32>
    %326 = arith.mulf %324, %325 : vector<32x32xf32>
    %327 = arith.addf %321, %326 : vector<32x32xf32>
    %328 = vector.extract_strided_slice %109 {offsets = [0, 6], sizes = [32, 1], strides = [1, 1]} : vector<32x8xf32> to vector<32x1xf32>
    %329 = vector.extract_strided_slice %131 {offsets = [3, 0], sizes = [1, 32], strides = [1, 1]} : vector<5x32xf32> to vector<1x32xf32>
    %330 = vector.broadcast %328 : vector<32x1xf32> to vector<32x32xf32>
    %331 = vector.broadcast %329 : vector<1x32xf32> to vector<32x32xf32>
    %332 = arith.mulf %330, %331 : vector<32x32xf32>
    %333 = arith.addf %327, %332 : vector<32x32xf32>
    %334 = vector.extract_strided_slice %109 {offsets = [0, 7], sizes = [32, 1], strides = [1, 1]} : vector<32x8xf32> to vector<32x1xf32>
    %335 = vector.extract_strided_slice %134 {offsets = [3, 0], sizes = [1, 32], strides = [1, 1]} : vector<5x32xf32> to vector<1x32xf32>
    %336 = vector.broadcast %334 : vector<32x1xf32> to vector<32x32xf32>
    %337 = vector.broadcast %335 : vector<1x32xf32> to vector<32x32xf32>
    %338 = arith.mulf %336, %337 : vector<32x32xf32>
    %339 = arith.addf %333, %338 : vector<32x32xf32>
    %c0_55 = arith.constant 0 : index
    %c3 = arith.constant 3 : index
    %c0_56 = arith.constant 0 : index
    %c0_57 = arith.constant 0 : index
    %340 = vector.load %arg7[%c0_55, %c3, %c0_56, %c0_57] : memref<1x5x32x32xf32, #tpu.memory_space<vmem>>, vector<1x1x32x32xf32>
    %341 = vector.shape_cast %340 : vector<1x1x32x32xf32> to vector<32x32xf32>
    %342 = vector.shape_cast %339 : vector<32x32xf32> to vector<1x1x32x32xf32>
    tpu.vector_store %arg7[%c0_55, %c3, %c0_56, %c0_57], %342 {strides = array<i32>} : memref<1x5x32x32xf32, #tpu.memory_space<vmem>>, vector<1x1x32x32xf32>,
    %cst_58 = arith.constant 0.000000e+00 : f32
    %343 = vector.broadcast %cst_58 : f32 to vector<32x32xf32>
    %344 = vector.extract_strided_slice %109 {offsets = [0, 0], sizes = [32, 1], strides = [1, 1]} : vector<32x8xf32> to vector<32x1xf32>
    %345 = vector.extract_strided_slice %113 {offsets = [4, 0], sizes = [1, 32], strides = [1, 1]} : vector<5x32xf32> to vector<1x32xf32>
    %346 = vector.broadcast %344 : vector<32x1xf32> to vector<32x32xf32>
    %347 = vector.broadcast %345 : vector<1x32xf32> to vector<32x32xf32>
    %348 = arith.mulf %346, %347 : vector<32x32xf32>
    %349 = arith.addf %343, %348 : vector<32x32xf32>
    %350 = vector.extract_strided_slice %109 {offsets = [0, 1], sizes = [32, 1], strides = [1, 1]} : vector<32x8xf32> to vector<32x1xf32>
    %351 = vector.extract_strided_slice %116 {offsets = [4, 0], sizes = [1, 32], strides = [1, 1]} : vector<5x32xf32> to vector<1x32xf32>
    %352 = vector.broadcast %350 : vector<32x1xf32> to vector<32x32xf32>
    %353 = vector.broadcast %351 : vector<1x32xf32> to vector<32x32xf32>
    %354 = arith.mulf %352, %353 : vector<32x32xf32>
    %355 = arith.addf %349, %354 : vector<32x32xf32>
    %356 = vector.extract_strided_slice %109 {offsets = [0, 2], sizes = [32, 1], strides = [1, 1]} : vector<32x8xf32> to vector<32x1xf32>
    %357 = vector.extract_strided_slice %119 {offsets = [4, 0], sizes = [1, 32], strides = [1, 1]} : vector<5x32xf32> to vector<1x32xf32>
    %358 = vector.broadcast %356 : vector<32x1xf32> to vector<32x32xf32>
    %359 = vector.broadcast %357 : vector<1x32xf32> to vector<32x32xf32>
    %360 = arith.mulf %358, %359 : vector<32x32xf32>
    %361 = arith.addf %355, %360 : vector<32x32xf32>
    %362 = vector.extract_strided_slice %109 {offsets = [0, 3], sizes = [32, 1], strides = [1, 1]} : vector<32x8xf32> to vector<32x1xf32>
    %363 = vector.extract_strided_slice %122 {offsets = [4, 0], sizes = [1, 32], strides = [1, 1]} : vector<5x32xf32> to vector<1x32xf32>
    %364 = vector.broadcast %362 : vector<32x1xf32> to vector<32x32xf32>
    %365 = vector.broadcast %363 : vector<1x32xf32> to vector<32x32xf32>
    %366 = arith.mulf %364, %365 : vector<32x32xf32>
    %367 = arith.addf %361, %366 : vector<32x32xf32>
    %368 = vector.extract_strided_slice %109 {offsets = [0, 4], sizes = [32, 1], strides = [1, 1]} : vector<32x8xf32> to vector<32x1xf32>
    %369 = vector.extract_strided_slice %125 {offsets = [4, 0], sizes = [1, 32], strides = [1, 1]} : vector<5x32xf32> to vector<1x32xf32>
    %370 = vector.broadcast %368 : vector<32x1xf32> to vector<32x32xf32>
    %371 = vector.broadcast %369 : vector<1x32xf32> to vector<32x32xf32>
    %372 = arith.mulf %370, %371 : vector<32x32xf32>
    %373 = arith.addf %367, %372 : vector<32x32xf32>
    %374 = vector.extract_strided_slice %109 {offsets = [0, 5], sizes = [32, 1], strides = [1, 1]} : vector<32x8xf32> to vector<32x1xf32>
    %375 = vector.extract_strided_slice %128 {offsets = [4, 0], sizes = [1, 32], strides = [1, 1]} : vector<5x32xf32> to vector<1x32xf32>
    %376 = vector.broadcast %374 : vector<32x1xf32> to vector<32x32xf32>
    %377 = vector.broadcast %375 : vector<1x32xf32> to vector<32x32xf32>
    %378 = arith.mulf %376, %377 : vector<32x32xf32>
    %379 = arith.addf %373, %378 : vector<32x32xf32>
    %380 = vector.extract_strided_slice %109 {offsets = [0, 6], sizes = [32, 1], strides = [1, 1]} : vector<32x8xf32> to vector<32x1xf32>
    %381 = vector.extract_strided_slice %131 {offsets = [4, 0], sizes = [1, 32], strides = [1, 1]} : vector<5x32xf32> to vector<1x32xf32>
    %382 = vector.broadcast %380 : vector<32x1xf32> to vector<32x32xf32>
    %383 = vector.broadcast %381 : vector<1x32xf32> to vector<32x32xf32>
    %384 = arith.mulf %382, %383 : vector<32x32xf32>
    %385 = arith.addf %379, %384 : vector<32x32xf32>
    %386 = vector.extract_strided_slice %109 {offsets = [0, 7], sizes = [32, 1], strides = [1, 1]} : vector<32x8xf32> to vector<32x1xf32>
    %387 = vector.extract_strided_slice %134 {offsets = [4, 0], sizes = [1, 32], strides = [1, 1]} : vector<5x32xf32> to vector<1x32xf32>
    %388 = vector.broadcast %386 : vector<32x1xf32> to vector<32x32xf32>
    %389 = vector.broadcast %387 : vector<1x32xf32> to vector<32x32xf32>
    %390 = arith.mulf %388, %389 : vector<32x32xf32>
    %391 = arith.addf %385, %390 : vector<32x32xf32>
    %c0_59 = arith.constant 0 : index
    %c4 = arith.constant 4 : index
    %c0_60 = arith.constant 0 : index
    %c0_61 = arith.constant 0 : index
    %392 = vector.load %arg7[%c0_59, %c4, %c0_60, %c0_61] : memref<1x5x32x32xf32, #tpu.memory_space<vmem>>, vector<1x1x32x32xf32>
    %393 = vector.shape_cast %392 : vector<1x1x32x32xf32> to vector<32x32xf32>
    %394 = vector.shape_cast %391 : vector<32x32xf32> to vector<1x1x32x32xf32>
    tpu.vector_store %arg7[%c0_59, %c4, %c0_60, %c0_61], %394 {strides = array<i32>} : memref<1x5x32x32xf32, #tpu.memory_space<vmem>>, vector<1x1x32x32xf32>,
    return
  }
  func.func @transform_0(%arg0: i32) -> (i32, i32, i32) {
    %c0_i32 = arith.constant 0 : i32
    %c0_i32_0 = arith.constant 0 : i32
    %c0_i32_1 = arith.constant 0 : i32
    return %arg0, %c0_i32, %c0_i32_0 : i32, i32, i32
  }
  func.func @transform_1(%arg0: i32) -> (i32, i32) {
    %c0_i32 = arith.constant 0 : i32
    %c0_i32_0 = arith.constant 0 : i32
    %c0_i32_1 = arith.constant 0 : i32
    return %c0_i32, %c0_i32_0 : i32, i32
  }
  func.func @transform_2(%arg0: i32) -> (i32, i32) {
    %c0_i32 = arith.constant 0 : i32
    %c0_i32_0 = arith.constant 0 : i32
    %c0_i32_1 = arith.constant 0 : i32
    return %c0_i32, %c0_i32_0 : i32, i32
  }
  func.func @transform_3(%arg0: i32) -> (i32, i32, i32) {
    %c0_i32 = arith.constant 0 : i32
    %c0_i32_0 = arith.constant 0 : i32
    %c0_i32_1 = arith.constant 0 : i32
    return %arg0, %c0_i32, %c0_i32_0 : i32, i32, i32
  }
  func.func @transform_4(%arg0: i32) -> (i32, i32) {
    %c0_i32 = arith.constant 0 : i32
    %c0_i32_0 = arith.constant 0 : i32
    %c0_i32_1 = arith.constant 0 : i32
    return %c0_i32, %c0_i32_0 : i32, i32
  }
  func.func @transform_5(%arg0: i32) -> (i32, i32) {
    %c0_i32 = arith.constant 0 : i32
    %c0_i32_0 = arith.constant 0 : i32
    %c0_i32_1 = arith.constant 0 : i32
    return %c0_i32, %c0_i32_0 : i32, i32
  }
  func.func @transform_6(%arg0: i32) -> (i32, i32, i32, i32) {
    %c0_i32 = arith.constant 0 : i32
    %c0_i32_0 = arith.constant 0 : i32
    %c0_i32_1 = arith.constant 0 : i32
    %c0_i32_2 = arith.constant 0 : i32
    return %arg0, %c0_i32, %c0_i32_0, %c0_i32_1 : i32, i32, i32, i32
  }
}

</mosaic_0001>

<llo_original>
// kernel: pronet_forward.1
$region0: #{pronet_forward.1}
  #allocation0 [shape = 'u32[]', space=smem, size = 0x4, offset = 0x4, fixed_abs, tag = 'smem constant byte address 0x4 - core index']
  #allocation1 [shape = 'u32[72,128]{1,0:T(1,128)}', space=vmem, size = 0x9000, scoped, tag = 'internal scratch']
  %s0 = inlined_call_operand.vmem [shape: bf16[2,128,48], index: 0, kind: input, shape index: {}]
  %s1 = inlined_call_operand.vmem [shape: bf16[48,32], index: 1, kind: input, shape index: {}]
  %s2 = inlined_call_operand.vmem [shape: f32[1,32], index: 2, kind: input, shape index: {}]
  %s3 = inlined_call_operand.vmem [shape: f32[2,5,64], index: 3, kind: input, shape index: {}]
  %s4 = inlined_call_operand.vmem [shape: f32[32,8], index: 4, kind: input, shape index: {}]
  %s5 = inlined_call_operand.vmem [shape: bf16[8,32], index: 5, kind: input, shape index: {}]
  %s6 = inlined_call_operand.hbm [shape: f32[2,5,32,32], index: 6, kind: output, shape index: {}]
  %s7 = sld [smem:[#allocation0]]
  $region57: #{pronet_forward.1} parent=0
    _
  %s9 = ssub.s32 1, %s7
  %s10 = scalar_select 0, %s9, %s7
  $region1: #{pronet_forward.1} parent=0
    #allocation2 [shape = 'u8[163840]{0}', space=vmem, size = 0x28000, scoped, tag = 'output window, operand 0']
    #allocation3 [shape = 's32[2]{0}', space=sflag, size = 0x8, scoped, tag = 'scoped memory for pronet_forward.1']
    %11 = vsyncpa [#allocation3], 0
    %s12 = scalar_lea.sflag [#allocation3], 1
    %13 = vsyncpa %s12, 0
    loop: start=0, step=1, limit=4
    $region2: #{pronet_forward.1} parent=1 // loop_pre_header
      _
    $region3: #{pronet_forward.1} parent=1 // loop_header
      %s15 = sphi 0, %s19
      %p16 = scmp.ge.s32.totalorder %s15, 4
      %s25 = sphi 0, %s27
      %s28 = sphi 0, %s25
      %s29 = sphi 0, %s28
      %s45 = sphi 0, %s29
      %s49 = sphi 0, %s49
      %s51 = sphi 0, %s49
      %s52 = sphi 0, %s51
      %s66 = sphi 0, %s52
      %s70 = sphi 0, %s70
      %s72 = sphi 0, %s70
      %s73 = sphi 0, %s72
      %s87 = sphi 0, %s73
      %s93 = sphi 0, %s95
      %s96 = sphi 0, %s93
      %s97 = sphi 0, %s96
      %s113 = sphi 0, %s97
      %s117 = sphi 0, %s117
      %s119 = sphi 0, %s117
      %s120 = sphi 0, %s119
      %s134 = sphi 0, %s120
      %s138 = sphi 0, %s138
      %s140 = sphi 0, %s138
      %s141 = sphi 0, %s140
      %s155 = sphi 0, %s141
      %s161 = sphi 0, %s163
      %s164 = sphi 0, %s161
      %s165 = sphi 0, %s164
      %s181 = sphi 0, %s165
    $region4: #{pronet_forward.1} parent=1 // loop_header_branch
      %18 = sbr.rel (%p16) target = $region8
    $region5: #{pronet_forward.1} parent=1 // loop_body
      %s20 = ssub.s32 %s15, 1
      %s21 = ssub.s32 %s15, 2
      %s22 = sadd.s32 %s15, 1
      %s23 = ssub.s32 %s15, %s22
      %p24 = scmp.eq.s32.totalorder %s23, 0
      %s26 = sadd.s32 %s25, 1
      %s27 = scalar_select %p24, %s25, %s26
      %p30 = pneg %p24
      %p31 = scmp.eq.s32.totalorder %s15, 1
      %p32 = por %p30, %p31
      %p33 = scmp.ne.s32.totalorder %s25, %s28
      %p34 = scmp.eq.s32.totalorder %s15, 0
      %p35 = por %p33, %p34
      %p36 = scmp.ne.s32.totalorder %s25, %s28
      %p37 = scmp.eq.s32.totalorder %s20, 1
      %p38 = por %p36, %p37
      %p39 = scmp.ne.s32.totalorder %s28, %s29
      %p40 = scmp.eq.s32.totalorder %s20, 0
      %p41 = por %p39, %p40
      %p42 = scmp.ne.s32.totalorder %s28, %s29
      %p43 = scmp.eq.s32.totalorder %s21, 1
      %p44 = por %p42, %p43
      %p46 = scmp.ne.s32.totalorder %s29, %s45
      %p47 = scmp.eq.s32.totalorder %s21, 0
      %p48 = por %p46, %p47
      %s50 = sadd.s32 %s49, 1
      %p53 = scmp.eq.s32.totalorder %s15, 1
      %p54 = scmp.ne.s32.totalorder %s49, %s51
      %p55 = scmp.eq.s32.totalorder %s15, 0
      %p56 = por %p54, %p55
      %p57 = scmp.ne.s32.totalorder %s49, %s51
      %p58 = scmp.eq.s32.totalorder %s20, 1
      %p59 = por %p57, %p58
      %p60 = scmp.ne.s32.totalorder %s51, %s52
      %p61 = scmp.eq.s32.totalorder %s20, 0
      %p62 = por %p60, %p61
      %p63 = scmp.ne.s32.totalorder %s51, %s52
      %p64 = scmp.eq.s32.totalorder %s21, 1
      %p65 = por %p63, %p64
      %p67 = scmp.ne.s32.totalorder %s52, %s66
      %p68 = scmp.eq.s32.totalorder %s21, 0
      %p69 = por %p67, %p68
      %s71 = sadd.s32 %s70, 1
      %p74 = scmp.eq.s32.totalorder %s15, 1
      %p75 = scmp.ne.s32.totalorder %s70, %s72
      %p76 = scmp.eq.s32.totalorder %s15, 0
      %p77 = por %p75, %p76
      %p78 = scmp.ne.s32.totalorder %s70, %s72
      %p79 = scmp.eq.s32.totalorder %s20, 1
      %p80 = por %p78, %p79
      %p81 = scmp.ne.s32.totalorder %s72, %s73
      %p82 = scmp.eq.s32.totalorder %s20, 0
      %p83 = por %p81, %p82
      %p84 = scmp.ne.s32.totalorder %s72, %s73
      %p85 = scmp.eq.s32.totalorder %s21, 1
      %p86 = por %p84, %p85
      %p88 = scmp.ne.s32.totalorder %s73, %s87
      %p89 = scmp.eq.s32.totalorder %s21, 0
      %p90 = por %p88, %p89
      %s91 = ssub.s32 %s15, %s22
      %p92 = scmp.eq.s32.totalorder %s91, 0
      %s94 = sadd.s32 %s93, 1
      %s95 = scalar_select %p92, %s93, %s94
      %p98 = pneg %p92
      %p99 = scmp.eq.s32.totalorder %s15, 1
      %p100 = por %p98, %p99
      %p101 = scmp.ne.s32.totalorder %s93, %s96
      %p102 = scmp.eq.s32.totalorder %s15, 0
      %p103 = por %p101, %p102
      %p104 = scmp.ne.s32.totalorder %s93, %s96
      %p105 = scmp.eq.s32.totalorder %s20, 1
      %p106 = por %p104, %p105
      %p107 = scmp.ne.s32.totalorder %s96, %s97
      %p108 = scmp.eq.s32.totalorder %s20, 0
      %p109 = por %p107, %p108
      %p110 = scmp.ne.s32.totalorder %s96, %s97
      %p111 = scmp.eq.s32.totalorder %s21, 1
      %p112 = por %p110, %p111
      %p114 = scmp.ne.s32.totalorder %s97, %s113
      %p115 = scmp.eq.s32.totalorder %s21, 0
      %p116 = por %p114, %p115
      %s118 = sadd.s32 %s117, 1
      %p121 = scmp.eq.s32.totalorder %s15, 1
      %p122 = scmp.ne.s32.totalorder %s117, %s119
      %p123 = scmp.eq.s32.totalorder %s15, 0
      %p124 = por %p122, %p123
      %p125 = scmp.ne.s32.totalorder %s117, %s119
      %p126 = scmp.eq.s32.totalorder %s20, 1
      %p127 = por %p125, %p126
      %p128 = scmp.ne.s32.totalorder %s119, %s120
      %p129 = scmp.eq.s32.totalorder %s20, 0
      %p130 = por %p128, %p129
      %p131 = scmp.ne.s32.totalorder %s119, %s120
      %p132 = scmp.eq.s32.totalorder %s21, 1
      %p133 = por %p131, %p132
      %p135 = scmp.ne.s32.totalorder %s120, %s134
      %p136 = scmp.eq.s32.totalorder %s21, 0
      %p137 = por %p135, %p136
      %s139 = sadd.s32 %s138, 1
      %p142 = scmp.eq.s32.totalorder %s15, 1
      %p143 = scmp.ne.s32.totalorder %s138, %s140
      %p144 = scmp.eq.s32.totalorder %s15, 0
      %p145 = por %p143, %p144
      %p146 = scmp.ne.s32.totalorder %s138, %s140
      %p147 = scmp.eq.s32.totalorder %s20, 1
      %p148 = por %p146, %p147
      %p149 = scmp.ne.s32.totalorder %s140, %s141
      %p150 = scmp.eq.s32.totalorder %s20, 0
      %p151 = por %p149, %p150
      %p152 = scmp.ne.s32.totalorder %s140, %s141
      %p153 = scmp.eq.s32.totalorder %s21, 1
      %p154 = por %p152, %p153
      %p156 = scmp.ne.s32.totalorder %s141, %s155
      %p157 = scmp.eq.s32.totalorder %s21, 0
      %p158 = por %p156, %p157
      %s159 = ssub.s32 %s15, %s22
      %p160 = scmp.eq.s32.totalorder %s159, 0
      %s162 = sadd.s32 %s161, 1
      %s163 = scalar_select %p160, %s161, %s162
      %p166 = pneg %p160
      %p167 = scmp.eq.s32.totalorder %s15, 1
      %p168 = por %p166, %p167
      %p169 = scmp.ne.s32.totalorder %s161, %s164
      %p170 = scmp.eq.s32.totalorder %s15, 0
      %p171 = por %p169, %p170
      %p172 = scmp.ne.s32.totalorder %s161, %s164
      %p173 = scmp.eq.s32.totalorder %s20, 1
      %p174 = por %p172, %p173
      %p175 = scmp.ne.s32.totalorder %s164, %s165
      %p176 = scmp.eq.s32.totalorder %s20, 0
      %p177 = por %p175, %p176
      %p178 = scmp.ne.s32.totalorder %s164, %s165
      %p179 = scmp.eq.s32.totalorder %s21, 1
      %p180 = por %p178, %p179
      %p182 = scmp.ne.s32.totalorder %s165, %s181
      %p183 = scmp.eq.s32.totalorder %s21, 0
      %p184 = por %p182, %p183
      %p185 = scmp.le.s32.totalorder 1, %s15
      %p186 = scmp.lt.s32.totalorder %s15, 3
      %p187 = pnand %p185, %p186
      %p188 = pneg %p187
      // Predicated region
      $region9: #{pronet_forward.1} parent=5 // pred_check
        _
      $region10: #{pronet_forward.1} parent=5 // pred_check_branch
        %190 = sbr.rel (%p187) target = $region12
      $region11: #{pronet_forward.1} parent=5 // pred_region
        %s191 = ssub.s32 %s15, 1
        // Predicated region
        $region13: #{pronet_forward.1} parent=11 // pred_check
          %p192 = pneg %p62
        $region14: #{pronet_forward.1} parent=11 // pred_check_branch
          %194 = sbr.rel (%p192) target = $region16
        $region15: #{pronet_forward.1} parent=11 // pred_region
          _
        $region16: #{pronet_forward.1} parent=11 // pred_fallthru
          _
        // Predicated region
        $region17: #{pronet_forward.1} parent=11 // pred_check
          %p195 = pneg %p83
        $region18: #{pronet_forward.1} parent=11 // pred_check_branch
          %197 = sbr.rel (%p195) target = $region20
        $region19: #{pronet_forward.1} parent=11 // pred_region
          _
        $region20: #{pronet_forward.1} parent=11 // pred_fallthru
          _
        // Predicated region
        $region21: #{pronet_forward.1} parent=11 // pred_check
          %p198 = pneg %p130
        $region22: #{pronet_forward.1} parent=11 // pred_check_branch
          %200 = sbr.rel (%p198) target = $region24
        $region23: #{pronet_forward.1} parent=11 // pred_region
          _
        $region24: #{pronet_forward.1} parent=11 // pred_fallthru
          _
        // Predicated region
        $region25: #{pronet_forward.1} parent=11 // pred_check
          %p201 = pneg %p151
        $region26: #{pronet_forward.1} parent=11 // pred_check_branch
          %203 = sbr.rel (%p201) target = $region28
        $region27: #{pronet_forward.1} parent=11 // pred_region
          _
        $region28: #{pronet_forward.1} parent=11 // pred_fallthru
          _
      $region12: #{pronet_forward.1} parent=5 // pred_fallthru
        _
      %p204 = scmp.lt.s32.totalorder %s15, 2
      // Predicated region
      $region29: #{pronet_forward.1} parent=5 // pred_check
        %p205 = pneg %p204
      $region30: #{pronet_forward.1} parent=5 // pred_check_branch
        %207 = sbr.rel (%p205) target = $region32
      $region31: #{pronet_forward.1} parent=5 // pred_region
        // Predicated region
        $region33: #{pronet_forward.1} parent=31 // pred_check
          %p208 = pneg %p35
        $region34: #{pronet_forward.1} parent=31 // pred_check_branch
          %210 = sbr.rel (%p208) target = $region36
        $region35: #{pronet_forward.1} parent=31 // pred_region
          %p211 = scmp.lt.s32.totalorder %s15, 1
          %s212 = scalar_select %p211, %s15, 1
          %s213 = smul.addr %s212, 16
          %s214 = smul.addr %s213, 4
          %s215 = scalar_lea.vmem %s0, %s214
        $region36: #{pronet_forward.1} parent=31 // pred_fallthru
          _
        // Predicated region
        $region37: #{pronet_forward.1} parent=31 // pred_check
          %p216 = pneg %p103
        $region38: #{pronet_forward.1} parent=31 // pred_check_branch
          %218 = sbr.rel (%p216) target = $region40
        $region39: #{pronet_forward.1} parent=31 // pred_region
          %p219 = scmp.lt.s32.totalorder %s15, 1
          %s220 = scalar_select %p219, %s15, 1
          %s221 = smul.addr %s220, 8
          %s222 = scalar_lea.vmem %s3, %s221
        $region40: #{pronet_forward.1} parent=31 // pred_fallthru
          _
      $region32: #{pronet_forward.1} parent=5 // pred_fallthru
        _
      %p223 = scmp.le.s32.totalorder 1, %s15
      %p224 = scmp.lt.s32.totalorder %s15, 3
      %p225 = pnand %p223, %p224
      %p226 = pneg %p225
      // Predicated region
      $region41: #{pronet_forward.1} parent=5 // pred_check
        _
      $region42: #{pronet_forward.1} parent=5 // pred_check_branch
        %228 = sbr.rel (%p225) target = $region44
      $region43: #{pronet_forward.1} parent=5 // pred_region
        %s229 = ssub.s32 %s15, 1
        %p230 = scmp.lt.s32.totalorder %s20, 1
        %s231 = scalar_select %p230, %s20, 1
        %s232 = smul.addr %s231, 16
        %s233 = smul.addr %s232, 4
        %s234 = scalar_lea.vmem %s0, %s233
        %p235 = pneg %p41
        %p236 = pneg %p38
        %p237 = pneg %p62
        %p238 = pneg %p59
        %p239 = pneg %p83
        %p240 = pneg %p80
        %p241 = scmp.lt.s32.totalorder %s20, 1
        %s242 = scalar_select %p241, %s20, 1
        %s243 = smul.addr %s242, 8
        %s244 = scalar_lea.vmem %s3, %s243
        %p245 = pneg %p109
        %p246 = pneg %p106
        %p247 = pneg %p130
        %p248 = pneg %p127
        %p249 = pneg %p151
        %p250 = pneg %p148
        %p251 = pneg %p177
        %p252 = pneg %p174
        %s253 = sand.u32 %s164, 1
        %s254 = scalar_lea.sflag [#allocation3], %s253
        %s255 = sand.u32 %s164, 1
        %s256 = smul.addr %s255, 160
        %s257 = scalar_lea.vmem [#allocation2], %s256
        %p258 = scmp.lt.s32.totalorder %s20, 1
        %s259 = scalar_select %p258, %s20, 1
        %s260 = smul.addr %s259, 16
        %s261 = smul.addr %s260, 4
        %s262 = scalar_lea.vmem %s0, %s261
        %p263 = scmp.lt.s32.totalorder %s20, 1
        %s264 = scalar_select %p263, %s20, 1
        %s265 = smul.addr %s264, 8
        %s266 = scalar_lea.vmem %s3, %s265
        %v268 = vld [vmem:[%s262] sm:$0xf]
        %v269 = vld [vmem:[%s262 + $0x4] sm:$0xf]
        %v270 = vld [vmem:[%s262 + $0x8] sm:$0xf]
        %v271 = vld [vmem:[%s262 + $0xc] sm:$0xf]
        %v272 = vld [vmem:[%s262 + $0x10] sm:$0xf]
        %v273 = vld [vmem:[%s262 + $0x14] sm:$0xf]
        %v274 = vld [vmem:[%s262 + $0x18] sm:$0xf]
        %v275 = vld [vmem:[%s262 + $0x1c] sm:$0xf]
        %v276 = vld [vmem:[%s262 + $0x20] sm:$0xf]
        %v277 = vld [vmem:[%s262 + $0x24] sm:$0xf]
        %v278 = vld [vmem:[%s262 + $0x28] sm:$0xf]
        %v279 = vld [vmem:[%s262 + $0x2c] sm:$0xf]
        %v280 = vld [vmem:[%s262 + $0x30] sm:$0xf]
        %v281 = vld [vmem:[%s262 + $0x34] sm:$0xf]
        %v282 = vld [vmem:[%s262 + $0x38] sm:$0xf]
        %v283 = vld [vmem:[%s262 + $0x3c] sm:$0xf]
        %v284 = vld [vmem:[%s1] sm:$0xf]
        %v285 = vld [vmem:[%s1 + $0x4] sm:$0xf]
        %v286 = vld [vmem:[%s1 + $0x8] sm:$0xf]
        %v287 = vld [vmem:[%s1 + $0xc] sm:$0xf]
        %v288 = vld [vmem:[%s1 + $0x10] sm:$0xf]
        %v289 = vld [vmem:[%s1 + $0x14] sm:$0xf]
        %v290 = vld [vmem:[%s2] sm:$0x1]
        %v292 = vperm.slane %v290, 0
        %v310 = vunpack.c.l.b16 %v268
        %v311 = vunpack.c.l.b16 %v269
        %v312 = vunpack.c.l.b16 %v270
        %v313 = vunpack.c.l.b16 %v271
        %v314 = vunpack.c.l.b16 %v272
        %v315 = vunpack.c.l.b16 %v273
        %v316 = vunpack.c.l.b16 %v274
        %v317 = vunpack.c.l.b16 %v275
        %v318 = vunpack.c.l.b16 %v276
        %v319 = vunpack.c.l.b16 %v277
        %v320 = vunpack.c.l.b16 %v278
        %v321 = vunpack.c.l.b16 %v279
        %v322 = vunpack.c.l.b16 %v280
        %v323 = vunpack.c.l.b16 %v281
        %v324 = vunpack.c.l.b16 %v282
        %v325 = vunpack.c.l.b16 %v283
        %v326 = vpack.c.b16 %v311, %v310
        %v327 = vpack.c.b16 %v313, %v312
        %v328 = vpack.c.b16 %v315, %v314
        %v329 = vpack.c.b16 %v317, %v316
        %v330 = vpack.c.b16 %v319, %v318
        %v331 = vpack.c.b16 %v321, %v320
        %v332 = vpack.c.b16 %v323, %v322
        %v333 = vpack.c.b16 %v325, %v324
        %v340 = vunpack.c.l.b16 %v284
        %v341 = vunpack.c.l.b16 %v285
        %v342 = vunpack.c.l.b16 %v286
        %v343 = vunpack.c.l.b16 %v287
        %v344 = vunpack.c.l.b16 %v288
        %v345 = vunpack.c.l.b16 %v289
        %v346 = vpack.c.b16 %v341, %v340
        %v347 = vpack.c.b16 %v343, %v342
        %v348 = vpack.c.b16 %v345, %v344
        %vm352 = vcmask 392192
        %v354 = vsel %vm352, %v326, 0
        %v357 = vsel %vm352, %v327, 0
        %v360 = vsel %vm352, %v328, 0
        %v363 = vsel %vm352, %v329, 0
        %v366 = vsel %vm352, %v330, 0
        %v369 = vsel %vm352, %v331, 0
        %v372 = vsel %vm352, %v332, 0
        %v375 = vsel %vm352, %v333, 0
        %377 = vmatpush.bf16.msra.mxu0 0
        %378 = vmatpush.bf16.msra.mxu0 0
        %379 = vmatpush.bf16.msra.mxu0 0
        %380 = vmatpush.bf16.msra.mxu0 0
        %381 = vmatpush.bf16.msra.mxu0 0
        %382 = vmatpush.bf16.msra.mxu0 %v348
        %383 = vmatpush.bf16.msra.mxu0 %v347
        %384 = vmatpush.bf16.msra.mxu0 %v346
        %385 = vmatmul.bf16.gmra.mxu0 %v354
        %v386 = vpop.f32.mrf.mxu0
        %v387 = vadd.f32 %v292, %v386
        %v388 = vpop.f32.mrf.mxu0
        %v389 = vadd.f32 %v292, %v388
        %390 = vmatmul.bf16.gmra.mxu0 %v357
        %v391 = vpop.f32.mrf.mxu0
        %v392 = vadd.f32 %v292, %v391
        %v393 = vpop.f32.mrf.mxu0
        %v394 = vadd.f32 %v292, %v393
        %395 = vmatmul.bf16.gmra.mxu0 %v360
        %v396 = vpop.f32.mrf.mxu0
        %v397 = vadd.f32 %v292, %v396
        %v398 = vpop.f32.mrf.mxu0
        %v399 = vadd.f32 %v292, %v398
        %400 = vmatmul.bf16.gmra.mxu0 %v363
        %v401 = vpop.f32.mrf.mxu0
        %v402 = vadd.f32 %v292, %v401
        %v403 = vpop.f32.mrf.mxu0
        %v404 = vadd.f32 %v292, %v403
        %405 = vmatmul.bf16.gmra.mxu0 %v366
        %v406 = vpop.f32.mrf.mxu0
        %v407 = vadd.f32 %v292, %v406
        %v408 = vpop.f32.mrf.mxu0
        %v409 = vadd.f32 %v292, %v408
        %410 = vmatmul.bf16.gmra.mxu0 %v369
        %v411 = vpop.f32.mrf.mxu0
        %v412 = vadd.f32 %v292, %v411
        %v413 = vpop.f32.mrf.mxu0
        %v414 = vadd.f32 %v292, %v413
        %415 = vmatmul.bf16.gmra.mxu0 %v372
        %v416 = vpop.f32.mrf.mxu0
        %v417 = vadd.f32 %v292, %v416
        %v418 = vpop.f32.mrf.mxu0
        %v419 = vadd.f32 %v292, %v418
        %420 = vmatmul.bf16.gmra.mxu0 %v375
        %v421 = vpop.f32.mrf.mxu0
        %v422 = vadd.f32 %v292, %v421
        %v423 = vpop.f32.mrf.mxu0
        %v424 = vadd.f32 %v292, %v423
        %425 = vdwg.mxu0
        %v426 = vmax.f32 %v387, 0.0
        %v427 = vmax.f32 %v389, 0.0
        %v428 = vmax.f32 %v392, 0.0
        %v429 = vmax.f32 %v394, 0.0
        %v430 = vmax.f32 %v397, 0.0
        %v431 = vmax.f32 %v399, 0.0
        %v432 = vmax.f32 %v402, 0.0
        %v433 = vmax.f32 %v404, 0.0
        %v434 = vmax.f32 %v407, 0.0
        %v435 = vmax.f32 %v409, 0.0
        %v436 = vmax.f32 %v412, 0.0
        %v437 = vmax.f32 %v414, 0.0
        %v438 = vmax.f32 %v417, 0.0
        %v439 = vmax.f32 %v419, 0.0
        %v440 = vmax.f32 %v422, 0.0
        %v441 = vmax.f32 %v424, 0.0
        %v442 = vmul.f32 %v426, %v426
        %v443 = vmul.f32 %v427, %v427
        %v444 = vmul.f32 %v428, %v428
        %v445 = vmul.f32 %v429, %v429
        %v446 = vmul.f32 %v430, %v430
        %v447 = vmul.f32 %v431, %v431
        %v448 = vmul.f32 %v432, %v432
        %v449 = vmul.f32 %v433, %v433
        %v450 = vmul.f32 %v434, %v434
        %v451 = vmul.f32 %v435, %v435
        %v452 = vmul.f32 %v436, %v436
        %v453 = vmul.f32 %v437, %v437
        %v454 = vmul.f32 %v438, %v438
        %v455 = vmul.f32 %v439, %v439
        %v456 = vmul.f32 %v440, %v440
        %v457 = vmul.f32 %v441, %v441
        %vm458 = vcmask 261120
        %v459 = vsel %vm458, %v442, 0.0
        %460 = vadd.xlane.f32.xlu0 %v459
        %v461 = vpop.xlane.xlu0 %460
        %v462 = vsel %vm458, %v443, 0.0
        %463 = vadd.xlane.f32.xlu0 %v462
        %v464 = vpop.xlane.xlu0 %463
        %v465 = vsel %vm458, %v444, 0.0
        %466 = vadd.xlane.f32.xlu0 %v465
        %v467 = vpop.xlane.xlu0 %466
        %v468 = vsel %vm458, %v445, 0.0
        %469 = vadd.xlane.f32.xlu0 %v468
        %v470 = vpop.xlane.xlu0 %469
        %v471 = vsel %vm458, %v446, 0.0
        %472 = vadd.xlane.f32.xlu0 %v471
        %v473 = vpop.xlane.xlu0 %472
        %v474 = vsel %vm458, %v447, 0.0
        %475 = vadd.xlane.f32.xlu0 %v474
        %v476 = vpop.xlane.xlu0 %475
        %v477 = vsel %vm458, %v448, 0.0
        %478 = vadd.xlane.f32.xlu0 %v477
        %v479 = vpop.xlane.xlu0 %478
        %v480 = vsel %vm458, %v449, 0.0
        %481 = vadd.xlane.f32.xlu0 %v480
        %v482 = vpop.xlane.xlu0 %481
        %v483 = vsel %vm458, %v450, 0.0
        %484 = vadd.xlane.f32.xlu0 %v483
        %v485 = vpop.xlane.xlu0 %484
        %v486 = vsel %vm458, %v451, 0.0
        %487 = vadd.xlane.f32.xlu0 %v486
        %v488 = vpop.xlane.xlu0 %487
        %v489 = vsel %vm458, %v452, 0.0
        %490 = vadd.xlane.f32.xlu0 %v489
        %v491 = vpop.xlane.xlu0 %490
        %v492 = vsel %vm458, %v453, 0.0
        %493 = vadd.xlane.f32.xlu0 %v492
        %v494 = vpop.xlane.xlu0 %493
        %v495 = vsel %vm458, %v454, 0.0
        %496 = vadd.xlane.f32.xlu0 %v495
        %v497 = vpop.xlane.xlu0 %496
        %v498 = vsel %vm458, %v455, 0.0
        %499 = vadd.xlane.f32.xlu0 %v498
        %v500 = vpop.xlane.xlu0 %499
        %v501 = vsel %vm458, %v456, 0.0
        %502 = vadd.xlane.f32.xlu0 %v501
        %v503 = vpop.xlane.xlu0 %502
        %v504 = vsel %vm458, %v457, 0.0
        %505 = vadd.xlane.f32.xlu0 %v504
        %v506 = vpop.xlane.xlu0 %505
        %v507 = vmax.f32 %v461, 1e-24
        %v508 = vmax.f32 %v464, 1e-24
        %v509 = vmax.f32 %v467, 1e-24
        %v510 = vmax.f32 %v470, 1e-24
        %v511 = vmax.f32 %v473, 1e-24
        %v512 = vmax.f32 %v476, 1e-24
        %v513 = vmax.f32 %v479, 1e-24
        %v514 = vmax.f32 %v482, 1e-24
        %v515 = vmax.f32 %v485, 1e-24
        %v516 = vmax.f32 %v488, 1e-24
        %v517 = vmax.f32 %v491, 1e-24
        %v518 = vmax.f32 %v494, 1e-24
        %v519 = vmax.f32 %v497, 1e-24
        %v520 = vmax.f32 %v500, 1e-24
        %v521 = vmax.f32 %v503, 1e-24
        %v522 = vmax.f32 %v506, 1e-24
        %v523 = vrsqrt.pop %v507
        %v524 = vmul.f32 %v523, %v507
        %v525 = vmul.f32 %v524, %v523
        %v526 = vmul.f32 0.5, %v525
        %v527 = vsub.f32 1.5, %v526
        %v528 = vmul.f32 %v523, %v527
        %vm529 = vweird.f32 %v507
        %vm530 = vweird.f32 %v523
        %vm531 = vmor %vm529, %vm530
        %v532 = vsel %vm531, %v523, %v528
        %v533 = vrsqrt.pop %v508
        %v534 = vmul.f32 %v533, %v508
        %v535 = vmul.f32 %v534, %v533
        %v536 = vmul.f32 0.5, %v535
        %v537 = vsub.f32 1.5, %v536
        %v538 = vmul.f32 %v533, %v537
        %vm539 = vweird.f32 %v508
        %vm540 = vweird.f32 %v533
        %vm541 = vmor %vm539, %vm540
        %v542 = vsel %vm541, %v533, %v538
        %v543 = vrsqrt.pop %v509
        %v544 = vmul.f32 %v543, %v509
        %v545 = vmul.f32 %v544, %v543
        %v546 = vmul.f32 0.5, %v545
        %v547 = vsub.f32 1.5, %v546
        %v548 = vmul.f32 %v543, %v547
        %vm549 = vweird.f32 %v509
        %vm550 = vweird.f32 %v543
        %vm551 = vmor %vm549, %vm550
        %v552 = vsel %vm551, %v543, %v548
        %v553 = vrsqrt.pop %v510
        %v554 = vmul.f32 %v553, %v510
        %v555 = vmul.f32 %v554, %v553
        %v556 = vmul.f32 0.5, %v555
        %v557 = vsub.f32 1.5, %v556
        %v558 = vmul.f32 %v553, %v557
        %vm559 = vweird.f32 %v510
        %vm560 = vweird.f32 %v553
        %vm561 = vmor %vm559, %vm560
        %v562 = vsel %vm561, %v553, %v558
        %v563 = vrsqrt.pop %v511
        %v564 = vmul.f32 %v563, %v511
        %v565 = vmul.f32 %v564, %v563
        %v566 = vmul.f32 0.5, %v565
        %v567 = vsub.f32 1.5, %v566
        %v568 = vmul.f32 %v563, %v567
        %vm569 = vweird.f32 %v511
        %vm570 = vweird.f32 %v563
        %vm571 = vmor %vm569, %vm570
        %v572 = vsel %vm571, %v563, %v568
        %v573 = vrsqrt.pop %v512
        %v574 = vmul.f32 %v573, %v512
        %v575 = vmul.f32 %v574, %v573
        %v576 = vmul.f32 0.5, %v575
        %v577 = vsub.f32 1.5, %v576
        %v578 = vmul.f32 %v573, %v577
        %vm579 = vweird.f32 %v512
        %vm580 = vweird.f32 %v573
        %vm581 = vmor %vm579, %vm580
        %v582 = vsel %vm581, %v573, %v578
        %v583 = vrsqrt.pop %v513
        %v584 = vmul.f32 %v583, %v513
        %v585 = vmul.f32 %v584, %v583
        %v586 = vmul.f32 0.5, %v585
        %v587 = vsub.f32 1.5, %v586
        %v588 = vmul.f32 %v583, %v587
        %vm589 = vweird.f32 %v513
        %vm590 = vweird.f32 %v583
        %vm591 = vmor %vm589, %vm590
        %v592 = vsel %vm591, %v583, %v588
        %v593 = vrsqrt.pop %v514
        %v594 = vmul.f32 %v593, %v514
        %v595 = vmul.f32 %v594, %v593
        %v596 = vmul.f32 0.5, %v595
        %v597 = vsub.f32 1.5, %v596
        %v598 = vmul.f32 %v593, %v597
        %vm599 = vweird.f32 %v514
        %vm600 = vweird.f32 %v593
        %vm601 = vmor %vm599, %vm600
        %v602 = vsel %vm601, %v593, %v598
        %v603 = vrsqrt.pop %v515
        %v604 = vmul.f32 %v603, %v515
        %v605 = vmul.f32 %v604, %v603
        %v606 = vmul.f32 0.5, %v605
        %v607 = vsub.f32 1.5, %v606
        %v608 = vmul.f32 %v603, %v607
        %vm609 = vweird.f32 %v515
        %vm610 = vweird.f32 %v603
        %vm611 = vmor %vm609, %vm610
        %v612 = vsel %vm611, %v603, %v608
        %v613 = vrsqrt.pop %v516
        %v614 = vmul.f32 %v613, %v516
        %v615 = vmul.f32 %v614, %v613
        %v616 = vmul.f32 0.5, %v615
        %v617 = vsub.f32 1.5, %v616
        %v618 = vmul.f32 %v613, %v617
        %vm619 = vweird.f32 %v516
        %vm620 = vweird.f32 %v613
        %vm621 = vmor %vm619, %vm620
        %v622 = vsel %vm621, %v613, %v618
        %v623 = vrsqrt.pop %v517
        %v624 = vmul.f32 %v623, %v517
        %v625 = vmul.f32 %v624, %v623
        %v626 = vmul.f32 0.5, %v625
        %v627 = vsub.f32 1.5, %v626
        %v628 = vmul.f32 %v623, %v627
        %vm629 = vweird.f32 %v517
        %vm630 = vweird.f32 %v623
        %vm631 = vmor %vm629, %vm630
        %v632 = vsel %vm631, %v623, %v628
        %v633 = vrsqrt.pop %v518
        %v634 = vmul.f32 %v633, %v518
        %v635 = vmul.f32 %v634, %v633
        %v636 = vmul.f32 0.5, %v635
        %v637 = vsub.f32 1.5, %v636
        %v638 = vmul.f32 %v633, %v637
        %vm639 = vweird.f32 %v518
        %vm640 = vweird.f32 %v633
        %vm641 = vmor %vm639, %vm640
        %v642 = vsel %vm641, %v633, %v638
        %v643 = vrsqrt.pop %v519
        %v644 = vmul.f32 %v643, %v519
        %v645 = vmul.f32 %v644, %v643
        %v646 = vmul.f32 0.5, %v645
        %v647 = vsub.f32 1.5, %v646
        %v648 = vmul.f32 %v643, %v647
        %vm649 = vweird.f32 %v519
        %vm650 = vweird.f32 %v643
        %vm651 = vmor %vm649, %vm650
        %v652 = vsel %vm651, %v643, %v648
        %v653 = vrsqrt.pop %v520
        %v654 = vmul.f32 %v653, %v520
        %v655 = vmul.f32 %v654, %v653
        %v656 = vmul.f32 0.5, %v655
        %v657 = vsub.f32 1.5, %v656
        %v658 = vmul.f32 %v653, %v657
        %vm659 = vweird.f32 %v520
        %vm660 = vweird.f32 %v653
        %vm661 = vmor %vm659, %vm660
        %v662 = vsel %vm661, %v653, %v658
        %v663 = vrsqrt.pop %v521
        %v664 = vmul.f32 %v663, %v521
        %v665 = vmul.f32 %v664, %v663
        %v666 = vmul.f32 0.5, %v665
        %v667 = vsub.f32 1.5, %v666
        %v668 = vmul.f32 %v663, %v667
        %vm669 = vweird.f32 %v521
        %vm670 = vweird.f32 %v663
        %vm671 = vmor %vm669, %vm670
        %v672 = vsel %vm671, %v663, %v668
        %v673 = vrsqrt.pop %v522
        %v674 = vmul.f32 %v673, %v522
        %v675 = vmul.f32 %v674, %v673
        %v676 = vmul.f32 0.5, %v675
        %v677 = vsub.f32 1.5, %v676
        %v678 = vmul.f32 %v673, %v677
        %vm679 = vweird.f32 %v522
        %vm680 = vweird.f32 %v673
        %vm681 = vmor %vm679, %vm680
        %v682 = vsel %vm681, %v673, %v678
        %v683 = vmul.f32 %v426, %v532
        %v684 = vmul.f32 %v427, %v542
        %v685 = vmul.f32 %v428, %v552
        %v686 = vmul.f32 %v429, %v562
        %v687 = vmul.f32 %v430, %v572
        %v688 = vmul.f32 %v431, %v582
        %v689 = vmul.f32 %v432, %v592
        %v690 = vmul.f32 %v433, %v602
        %v691 = vmul.f32 %v434, %v612
        %v692 = vmul.f32 %v435, %v622
        %v693 = vmul.f32 %v436, %v632
        %v694 = vmul.f32 %v437, %v642
        %v695 = vmul.f32 %v438, %v652
        %v696 = vmul.f32 %v439, %v662
        %v697 = vmul.f32 %v440, %v672
        %v698 = vmul.f32 %v441, %v682
        %v699 = vpack.c.bf16 %v683, %v683
        %v700 = vpack.c.bf16 %v684, %v684
        %v701 = vpack.c.bf16 %v685, %v685
        %v702 = vpack.c.bf16 %v686, %v686
        %v703 = vpack.c.bf16 %v687, %v687
        %v704 = vpack.c.bf16 %v688, %v688
        %v705 = vpack.c.bf16 %v689, %v689
        %v706 = vpack.c.bf16 %v690, %v690
        %v707 = vpack.c.bf16 %v691, %v691
        %v708 = vpack.c.bf16 %v692, %v692
        %v709 = vpack.c.bf16 %v693, %v693
        %v710 = vpack.c.bf16 %v694, %v694
        %v711 = vpack.c.bf16 %v695, %v695
        %v712 = vpack.c.bf16 %v696, %v696
        %v713 = vpack.c.bf16 %v697, %v697
        %v714 = vpack.c.bf16 %v698, %v698
        %v723 = vunpack.c.l.b16 %v699
        %v724 = vunpack.c.l.b16 %v700
        %v725 = vunpack.c.l.b16 %v701
        %v726 = vunpack.c.l.b16 %v702
        %v727 = vunpack.c.l.b16 %v703
        %v728 = vunpack.c.l.b16 %v704
        %v729 = vunpack.c.l.b16 %v705
        %v730 = vunpack.c.l.b16 %v706
        %v731 = vpack.c.b16 %v724, %v723
        %v732 = vpack.c.b16 %v726, %v725
        %v733 = vpack.c.b16 %v728, %v727
        %v734 = vpack.c.b16 %v730, %v729
        %v743 = vunpack.c.l.b16 %v707
        %v744 = vunpack.c.l.b16 %v708
        %v745 = vunpack.c.l.b16 %v709
        %v746 = vunpack.c.l.b16 %v710
        %v747 = vunpack.c.l.b16 %v711
        %v748 = vunpack.c.l.b16 %v712
        %v749 = vunpack.c.l.b16 %v713
        %v750 = vunpack.c.l.b16 %v714
        %v751 = vpack.c.b16 %v744, %v743
        %v752 = vpack.c.b16 %v746, %v745
        %v753 = vpack.c.b16 %v748, %v747
        %v754 = vpack.c.b16 %v750, %v749
        %v756 = vsel %vm458, %v731, 0
        %v759 = vsel %vm458, %v732, 0
        %v762 = vsel %vm458, %v733, 0
        %v765 = vsel %vm458, %v734, 0
        %v768 = vsel %vm458, %v751, 0
        %v771 = vsel %vm458, %v752, 0
        %v774 = vsel %vm458, %v753, 0
        %v777 = vsel %vm458, %v754, 0
        %779 = vmatpush.bf16.xpose.msra.mxu0 0
        %780 = vmatpush.bf16.xpose.msra.mxu0 0
        %781 = vmatpush.bf16.xpose.msra.mxu0 0
        %782 = vmatpush.bf16.xpose.msra.mxu0 0
        %783 = vmatpush.bf16.xpose.msra.mxu0 %v777
        %784 = vmatpush.bf16.xpose.msra.mxu0 %v774
        %785 = vmatpush.bf16.xpose.msra.mxu0 %v771
        %786 = vmatpush.bf16.xpose.msra.mxu0 %v768
        %787 = vmatmul.bf16.gmra.mxu0 %v756
        %v788 = vpop.f32.mrf.mxu0
        %v789 = vadd.f32 0.0, %v788
        %v790 = vpop.f32.mrf.mxu0
        %v791 = vadd.f32 0.0, %v790
        %792 = vmatmul.bf16.gmra.mxu0 %v759
        %v793 = vpop.f32.mrf.mxu0
        %v794 = vadd.f32 0.0, %v793
        %v795 = vpop.f32.mrf.mxu0
        %v796 = vadd.f32 0.0, %v795
        %797 = vmatmul.bf16.gmra.mxu0 %v762
        %v798 = vpop.f32.mrf.mxu0
        %v799 = vadd.f32 0.0, %v798
        %v800 = vpop.f32.mrf.mxu0
        %v801 = vadd.f32 0.0, %v800
        %802 = vmatmul.bf16.gmra.mxu0 %v765
        %v803 = vpop.f32.mrf.mxu0
        %v804 = vadd.f32 0.0, %v803
        %v805 = vpop.f32.mrf.mxu0
        %v806 = vadd.f32 0.0, %v805
        %807 = vdwg.mxu0
        %v808 = vlaneseq
        %v809 = vshrl.u32 %v808, 7
        %v810 = vadd.s32 %v809, 8
        %v811 = vadd.s32 %v809, 16
        %v812 = vadd.s32 %v809, 24
        %v813 = vadd.s32 %v809, 32
        %v814 = vadd.s32 %v809, 40
        %v815 = vadd.s32 %v809, 48
        %v816 = vadd.s32 %v809, 56
        %vm817 = vcmask 523264
        %v818 = vsel %vm817, %v789, -inf
        %v819 = vsel %vm817, %v791, -inf
        %v820 = vsel %vm817, %v794, -inf
        %v821 = vsel %vm817, %v796, -inf
        %v822 = vsel %vm817, %v799, -inf
        %v823 = vmax.f32 %v818, %v822
        %v824 = vsel %vm817, %v801, -inf
        %v825 = vmax.f32 %v819, %v824
        %v826 = vsel %vm817, %v804, -inf
        %v827 = vmax.f32 %v820, %v826
        %v828 = vsel %vm817, %v806, -inf
        %v829 = vmax.f32 %v821, %v828
        %v830 = vmax.f32 %v823, %v825
        %v831 = vmax.f32 %v827, %v829
        %v832 = vmax.f32 %v830, %v831
        %v833 = vrot.slane %v832, 4
        %v834 = vmax.f32 %v832, %v833
        %v835 = vrot.slane %v834, 2
        %v836 = vmax.f32 %v834, %v835
        %v837 = vrot.slane %v836, 1
        %v838 = vmax.f32 %v836, %v837
        %vm839 = vcmp.eq.f32.partialorder %v789, %v838
        %vm840 = vcmp.eq.f32.partialorder %v791, %v838
        %vm841 = vcmp.eq.f32.partialorder %v794, %v838
        %vm842 = vcmp.eq.f32.partialorder %v796, %v838
        %vm843 = vcmp.eq.f32.partialorder %v799, %v838
        %vm844 = vcmp.eq.f32.partialorder %v801, %v838
        %vm845 = vcmp.eq.f32.partialorder %v804, %v838
        %vm846 = vcmp.eq.f32.partialorder %v806, %v838
        %v847 = vsel %vm839, %v809, 64
        %v848 = vsel %vm840, %v810, 64
        %v849 = vsel %vm841, %v811, 64
        %v850 = vsel %vm842, %v812, 64
        %v851 = vsel %vm843, %v813, 64
        %v852 = vsel %vm844, %v814, 64
        %v853 = vsel %vm845, %v815, 64
        %v854 = vsel %vm846, %v816, 64
        %v855 = vsel %vm817, %v847, 2147483647
        %v856 = vsel %vm817, %v848, 2147483647
        %v857 = vsel %vm817, %v849, 2147483647
        %v858 = vsel %vm817, %v850, 2147483647
        %v859 = vsel %vm817, %v851, 2147483647
        %vm860 = vcmp.lt.s32.totalorder %v855, %v859
        %v861 = vsel %vm860, %v855, %v859
        %v862 = vsel %vm817, %v852, 2147483647
        %vm863 = vcmp.lt.s32.totalorder %v856, %v862
        %v864 = vsel %vm863, %v856, %v862
        %v865 = vsel %vm817, %v853, 2147483647
        %vm866 = vcmp.lt.s32.totalorder %v857, %v865
        %v867 = vsel %vm866, %v857, %v865
        %v868 = vsel %vm817, %v854, 2147483647
        %vm869 = vcmp.lt.s32.totalorder %v858, %v868
        %v870 = vsel %vm869, %v858, %v868
        %vm871 = vcmp.lt.s32.totalorder %v861, %v864
        %v872 = vsel %vm871, %v861, %v864
        %vm873 = vcmp.lt.s32.totalorder %v867, %v870
        %v874 = vsel %vm873, %v867, %v870
        %vm875 = vcmp.lt.s32.totalorder %v872, %v874
        %v876 = vsel %vm875, %v872, %v874
        %v877 = vrot.slane %v876, 4
        %vm878 = vcmp.lt.s32.totalorder %v876, %v877
        %v879 = vsel %vm878, %v876, %v877
        %v880 = vrot.slane %v879, 2
        %vm881 = vcmp.lt.s32.totalorder %v879, %v880
        %v882 = vsel %vm881, %v879, %v880
        %v883 = vrot.slane %v882, 1
        %vm884 = vcmp.lt.s32.totalorder %v882, %v883
        %v885 = vsel %vm884, %v882, %v883
        %vm886 = vcmp.eq.s32.totalorder %v809, %v885
        %vm887 = vcmp.eq.s32.totalorder %v810, %v885
        %vm888 = vcmp.eq.s32.totalorder %v811, %v885
        %vm889 = vcmp.eq.s32.totalorder %v812, %v885
        %vm890 = vcmp.eq.s32.totalorder %v813, %v885
        %vm891 = vcmp.eq.s32.totalorder %v814, %v885
        %vm892 = vcmp.eq.s32.totalorder %v815, %v885
        %vm893 = vcmp.eq.s32.totalorder %v816, %v885
        %v894 = vsel %vm886, 1, 0
        %v895 = vsel %vm887, 1, 0
        %v896 = vsel %vm888, 1, 0
        %v897 = vsel %vm889, 1, 0
        %v898 = vsel %vm890, 1, 0
        %v899 = vsel %vm891, 1, 0
        %v900 = vsel %vm892, 1, 0
        %v901 = vsel %vm893, 1, 0
        %v902 = vcvt.s32.f32 %v894
        %v903 = vcvt.s32.f32 %v895
        %v904 = vcvt.s32.f32 %v896
        %v905 = vcvt.s32.f32 %v897
        %v906 = vcvt.s32.f32 %v898
        %v907 = vcvt.s32.f32 %v899
        %v908 = vcvt.s32.f32 %v900
        %v909 = vcvt.s32.f32 %v901
        %v910 = vmul.f32 %v902, %v838
        %v911 = vmul.f32 %v903, %v838
        %v912 = vmul.f32 %v904, %v838
        %v913 = vmul.f32 %v905, %v838
        %v914 = vmul.f32 %v906, %v838
        %v915 = vmul.f32 %v907, %v838
        %v916 = vmul.f32 %v908, %v838
        %v917 = vmul.f32 %v909, %v838
        %v918 = vadd.f32 %v910, 0.0
        %v919 = vadd.f32 %v911, 0.0
        %v920 = vadd.f32 %v912, 0.0
        %v921 = vadd.f32 %v913, 0.0
        %v922 = vadd.f32 %v914, 0.0
        %v923 = vadd.f32 %v915, 0.0
        %v924 = vadd.f32 %v916, 0.0
        %v925 = vadd.f32 %v917, 0.0
        %v926 = vmul.f32 %v902, 1e+09
        %v927 = vmul.f32 %v903, 1e+09
        %v928 = vmul.f32 %v904, 1e+09
        %v929 = vmul.f32 %v905, 1e+09
        %v930 = vmul.f32 %v906, 1e+09
        %v931 = vmul.f32 %v907, 1e+09
        %v932 = vmul.f32 %v908, 1e+09
        %v933 = vmul.f32 %v909, 1e+09
        %v934 = vsub.f32 %v789, %v926
        %v935 = vsub.f32 %v791, %v927
        %v936 = vsub.f32 %v794, %v928
        %v937 = vsub.f32 %v796, %v929
        %v938 = vsub.f32 %v799, %v930
        %v939 = vsub.f32 %v801, %v931
        %v940 = vsub.f32 %v804, %v932
        %v941 = vsub.f32 %v806, %v933
        %v942 = vsel %vm817, %v934, -inf
        %v943 = vsel %vm817, %v935, -inf
        %v944 = vsel %vm817, %v936, -inf
        %v945 = vsel %vm817, %v937, -inf
        %v946 = vsel %vm817, %v938, -inf
        %v947 = vmax.f32 %v942, %v946
        %v948 = vsel %vm817, %v939, -inf
        %v949 = vmax.f32 %v943, %v948
        %v950 = vsel %vm817, %v940, -inf
        %v951 = vmax.f32 %v944, %v950
        %v952 = vsel %vm817, %v941, -inf
        %v953 = vmax.f32 %v945, %v952
        %v954 = vmax.f32 %v947, %v949
        %v955 = vmax.f32 %v951, %v953
        %v956 = vmax.f32 %v954, %v955
        %v957 = vrot.slane %v956, 4
        %v958 = vmax.f32 %v956, %v957
        %v959 = vrot.slane %v958, 2
        %v960 = vmax.f32 %v958, %v959
        %v961 = vrot.slane %v960, 1
        %v962 = vmax.f32 %v960, %v961
        %vm963 = vcmp.eq.f32.partialorder %v934, %v962
        %vm964 = vcmp.eq.f32.partialorder %v935, %v962
        %vm965 = vcmp.eq.f32.partialorder %v936, %v962
        %vm966 = vcmp.eq.f32.partialorder %v937, %v962
        %vm967 = vcmp.eq.f32.partialorder %v938, %v962
        %vm968 = vcmp.eq.f32.partialorder %v939, %v962
        %vm969 = vcmp.eq.f32.partialorder %v940, %v962
        %vm970 = vcmp.eq.f32.partialorder %v941, %v962
        %v971 = vsel %vm963, %v809, 64
        %v972 = vsel %vm964, %v810, 64
        %v973 = vsel %vm965, %v811, 64
        %v974 = vsel %vm966, %v812, 64
        %v975 = vsel %vm967, %v813, 64
        %v976 = vsel %vm968, %v814, 64
        %v977 = vsel %vm969, %v815, 64
        %v978 = vsel %vm970, %v816, 64
        %v979 = vsel %vm817, %v971, 2147483647
        %v980 = vsel %vm817, %v972, 2147483647
        %v981 = vsel %vm817, %v973, 2147483647
        %v982 = vsel %vm817, %v974, 2147483647
        %v983 = vsel %vm817, %v975, 2147483647
        %vm984 = vcmp.lt.s32.totalorder %v979, %v983
        %v985 = vsel %vm984, %v979, %v983
        %v986 = vsel %vm817, %v976, 2147483647
        %vm987 = vcmp.lt.s32.totalorder %v980, %v986
        %v988 = vsel %vm987, %v980, %v986
        %v989 = vsel %vm817, %v977, 2147483647
        %vm990 = vcmp.lt.s32.totalorder %v981, %v989
        %v991 = vsel %vm990, %v981, %v989
        %v992 = vsel %vm817, %v978, 2147483647
        %vm993 = vcmp.lt.s32.totalorder %v982, %v992
        %v994 = vsel %vm993, %v982, %v992
        %vm995 = vcmp.lt.s32.totalorder %v985, %v988
        %v996 = vsel %vm995, %v985, %v988
        %vm997 = vcmp.lt.s32.totalorder %v991, %v994
        %v998 = vsel %vm997, %v991, %v994
        %vm999 = vcmp.lt.s32.totalorder %v996, %v998
        %v1000 = vsel %vm999, %v996, %v998
        %v1001 = vrot.slane %v1000, 4
        %vm1002 = vcmp.lt.s32.totalorder %v1000, %v1001
        %v1003 = vsel %vm1002, %v1000, %v1001
        %v1004 = vrot.slane %v1003, 2
        %vm1005 = vcmp.lt.s32.totalorder %v1003, %v1004
        %v1006 = vsel %vm1005, %v1003, %v1004
        %v1007 = vrot.slane %v1006, 1
        %vm1008 = vcmp.lt.s32.totalorder %v1006, %v1007
        %v1009 = vsel %vm1008, %v1006, %v1007
        %vm1010 = vcmp.eq.s32.totalorder %v809, %v1009
        %vm1011 = vcmp.eq.s32.totalorder %v810, %v1009
        %vm1012 = vcmp.eq.s32.totalorder %v811, %v1009
        %vm1013 = vcmp.eq.s32.totalorder %v812, %v1009
        %vm1014 = vcmp.eq.s32.totalorder %v813, %v1009
        %vm1015 = vcmp.eq.s32.totalorder %v814, %v1009
        %vm1016 = vcmp.eq.s32.totalorder %v815, %v1009
        %vm1017 = vcmp.eq.s32.totalorder %v816, %v1009
        %v1018 = vsel %vm1010, 1, 0
        %v1019 = vsel %vm1011, 1, 0
        %v1020 = vsel %vm1012, 1, 0
        %v1021 = vsel %vm1013, 1, 0
        %v1022 = vsel %vm1014, 1, 0
        %v1023 = vsel %vm1015, 1, 0
        %v1024 = vsel %vm1016, 1, 0
        %v1025 = vsel %vm1017, 1, 0
        %v1026 = vcvt.s32.f32 %v1018
        %v1027 = vcvt.s32.f32 %v1019
        %v1028 = vcvt.s32.f32 %v1020
        %v1029 = vcvt.s32.f32 %v1021
        %v1030 = vcvt.s32.f32 %v1022
        %v1031 = vcvt.s32.f32 %v1023
        %v1032 = vcvt.s32.f32 %v1024
        %v1033 = vcvt.s32.f32 %v1025
        %v1034 = vmul.f32 %v1026, %v962
        %v1035 = vmul.f32 %v1027, %v962
        %v1036 = vmul.f32 %v1028, %v962
        %v1037 = vmul.f32 %v1029, %v962
        %v1038 = vmul.f32 %v1030, %v962
        %v1039 = vmul.f32 %v1031, %v962
        %v1040 = vmul.f32 %v1032, %v962
        %v1041 = vmul.f32 %v1033, %v962
        %v1042 = vadd.f32 %v918, %v1034
        %v1043 = vadd.f32 %v919, %v1035
        %v1044 = vadd.f32 %v920, %v1036
        %v1045 = vadd.f32 %v921, %v1037
        %v1046 = vadd.f32 %v922, %v1038
        %v1047 = vadd.f32 %v923, %v1039
        %v1048 = vadd.f32 %v924, %v1040
        %v1049 = vadd.f32 %v925, %v1041
        %v1050 = vmul.f32 %v1026, 1e+09
        %v1051 = vmul.f32 %v1027, 1e+09
        %v1052 = vmul.f32 %v1028, 1e+09
        %v1053 = vmul.f32 %v1029, 1e+09
        %v1054 = vmul.f32 %v1030, 1e+09
        %v1055 = vmul.f32 %v1031, 1e+09
        %v1056 = vmul.f32 %v1032, 1e+09
        %v1057 = vmul.f32 %v1033, 1e+09
        %v1058 = vsub.f32 %v934, %v1050
        %v1059 = vsub.f32 %v935, %v1051
        %v1060 = vsub.f32 %v936, %v1052
        %v1061 = vsub.f32 %v937, %v1053
        %v1062 = vsub.f32 %v938, %v1054
        %v1063 = vsub.f32 %v939, %v1055
        %v1064 = vsub.f32 %v940, %v1056
        %v1065 = vsub.f32 %v941, %v1057
        %v1066 = vsel %vm817, %v1058, -inf
        %v1067 = vsel %vm817, %v1059, -inf
        %v1068 = vsel %vm817, %v1060, -inf
        %v1069 = vsel %vm817, %v1061, -inf
        %v1070 = vsel %vm817, %v1062, -inf
        %v1071 = vmax.f32 %v1066, %v1070
        %v1072 = vsel %vm817, %v1063, -inf
        %v1073 = vmax.f32 %v1067, %v1072
        %v1074 = vsel %vm817, %v1064, -inf
        %v1075 = vmax.f32 %v1068, %v1074
        %v1076 = vsel %vm817, %v1065, -inf
        %v1077 = vmax.f32 %v1069, %v1076
        %v1078 = vmax.f32 %v1071, %v1073
        %v1079 = vmax.f32 %v1075, %v1077
        %v1080 = vmax.f32 %v1078, %v1079
        %v1081 = vrot.slane %v1080, 4
        %v1082 = vmax.f32 %v1080, %v1081
        %v1083 = vrot.slane %v1082, 2
        %v1084 = vmax.f32 %v1082, %v1083
        %v1085 = vrot.slane %v1084, 1
        %v1086 = vmax.f32 %v1084, %v1085
        %vm1087 = vcmp.eq.f32.partialorder %v1058, %v1086
        %vm1088 = vcmp.eq.f32.partialorder %v1059, %v1086
        %vm1089 = vcmp.eq.f32.partialorder %v1060, %v1086
        %vm1090 = vcmp.eq.f32.partialorder %v1061, %v1086
        %vm1091 = vcmp.eq.f32.partialorder %v1062, %v1086
        %vm1092 = vcmp.eq.f32.partialorder %v1063, %v1086
        %vm1093 = vcmp.eq.f32.partialorder %v1064, %v1086
        %vm1094 = vcmp.eq.f32.partialorder %v1065, %v1086
        %v1095 = vsel %vm1087, %v809, 64
        %v1096 = vsel %vm1088, %v810, 64
        %v1097 = vsel %vm1089, %v811, 64
        %v1098 = vsel %vm1090, %v812, 64
        %v1099 = vsel %vm1091, %v813, 64
        %v1100 = vsel %vm1092, %v814, 64
        %v1101 = vsel %vm1093, %v815, 64
        %v1102 = vsel %vm1094, %v816, 64
        %v1103 = vsel %vm817, %v1095, 2147483647
        %v1104 = vsel %vm817, %v1096, 2147483647
        %v1105 = vsel %vm817, %v1097, 2147483647
        %v1106 = vsel %vm817, %v1098, 2147483647
        %v1107 = vsel %vm817, %v1099, 2147483647
        %vm1108 = vcmp.lt.s32.totalorder %v1103, %v1107
        %v1109 = vsel %vm1108, %v1103, %v1107
        %v1110 = vsel %vm817, %v1100, 2147483647
        %vm1111 = vcmp.lt.s32.totalorder %v1104, %v1110
        %v1112 = vsel %vm1111, %v1104, %v1110
        %v1113 = vsel %vm817, %v1101, 2147483647
        %vm1114 = vcmp.lt.s32.totalorder %v1105, %v1113
        %v1115 = vsel %vm1114, %v1105, %v1113
        %v1116 = vsel %vm817, %v1102, 2147483647
        %vm1117 = vcmp.lt.s32.totalorder %v1106, %v1116
        %v1118 = vsel %vm1117, %v1106, %v1116
        %vm1119 = vcmp.lt.s32.totalorder %v1109, %v1112
        %v1120 = vsel %vm1119, %v1109, %v1112
        %vm1121 = vcmp.lt.s32.totalorder %v1115, %v1118
        %v1122 = vsel %vm1121, %v1115, %v1118
        %vm1123 = vcmp.lt.s32.totalorder %v1120, %v1122
        %v1124 = vsel %vm1123, %v1120, %v1122
        %v1125 = vrot.slane %v1124, 4
        %vm1126 = vcmp.lt.s32.totalorder %v1124, %v1125
        %v1127 = vsel %vm1126, %v1124, %v1125
        %v1128 = vrot.slane %v1127, 2
        %vm1129 = vcmp.lt.s32.totalorder %v1127, %v1128
        %v1130 = vsel %vm1129, %v1127, %v1128
        %v1131 = vrot.slane %v1130, 1
        %vm1132 = vcmp.lt.s32.totalorder %v1130, %v1131
        %v1133 = vsel %vm1132, %v1130, %v1131
        %vm1134 = vcmp.eq.s32.totalorder %v809, %v1133
        %vm1135 = vcmp.eq.s32.totalorder %v810, %v1133
        %vm1136 = vcmp.eq.s32.totalorder %v811, %v1133
        %vm1137 = vcmp.eq.s32.totalorder %v812, %v1133
        %vm1138 = vcmp.eq.s32.totalorder %v813, %v1133
        %vm1139 = vcmp.eq.s32.totalorder %v814, %v1133
        %vm1140 = vcmp.eq.s32.totalorder %v815, %v1133
        %vm1141 = vcmp.eq.s32.totalorder %v816, %v1133
        %v1142 = vsel %vm1134, 1, 0
        %v1143 = vsel %vm1135, 1, 0
        %v1144 = vsel %vm1136, 1, 0
        %v1145 = vsel %vm1137, 1, 0
        %v1146 = vsel %vm1138, 1, 0
        %v1147 = vsel %vm1139, 1, 0
        %v1148 = vsel %vm1140, 1, 0
        %v1149 = vsel %vm1141, 1, 0
        %v1150 = vcvt.s32.f32 %v1142
        %v1151 = vcvt.s32.f32 %v1143
        %v1152 = vcvt.s32.f32 %v1144
        %v1153 = vcvt.s32.f32 %v1145
        %v1154 = vcvt.s32.f32 %v1146
        %v1155 = vcvt.s32.f32 %v1147
        %v1156 = vcvt.s32.f32 %v1148
        %v1157 = vcvt.s32.f32 %v1149
        %v1158 = vmul.f32 %v1150, %v1086
        %v1159 = vmul.f32 %v1151, %v1086
        %v1160 = vmul.f32 %v1152, %v1086
        %v1161 = vmul.f32 %v1153, %v1086
        %v1162 = vmul.f32 %v1154, %v1086
        %v1163 = vmul.f32 %v1155, %v1086
        %v1164 = vmul.f32 %v1156, %v1086
        %v1165 = vmul.f32 %v1157, %v1086
        %v1166 = vadd.f32 %v1042, %v1158
        %v1167 = vadd.f32 %v1043, %v1159
        %v1168 = vadd.f32 %v1044, %v1160
        %v1169 = vadd.f32 %v1045, %v1161
        %v1170 = vadd.f32 %v1046, %v1162
        %v1171 = vadd.f32 %v1047, %v1163
        %v1172 = vadd.f32 %v1048, %v1164
        %v1173 = vadd.f32 %v1049, %v1165
        %v1174 = vmul.f32 %v1150, 1e+09
        %v1175 = vmul.f32 %v1151, 1e+09
        %v1176 = vmul.f32 %v1152, 1e+09
        %v1177 = vmul.f32 %v1153, 1e+09
        %v1178 = vmul.f32 %v1154, 1e+09
        %v1179 = vmul.f32 %v1155, 1e+09
        %v1180 = vmul.f32 %v1156, 1e+09
        %v1181 = vmul.f32 %v1157, 1e+09
        %v1182 = vsub.f32 %v1058, %v1174
        %v1183 = vsub.f32 %v1059, %v1175
        %v1184 = vsub.f32 %v1060, %v1176
        %v1185 = vsub.f32 %v1061, %v1177
        %v1186 = vsub.f32 %v1062, %v1178
        %v1187 = vsub.f32 %v1063, %v1179
        %v1188 = vsub.f32 %v1064, %v1180
        %v1189 = vsub.f32 %v1065, %v1181
        %v1190 = vsel %vm817, %v1182, -inf
        %v1191 = vsel %vm817, %v1183, -inf
        %v1192 = vsel %vm817, %v1184, -inf
        %v1193 = vsel %vm817, %v1185, -inf
        %v1194 = vsel %vm817, %v1186, -inf
        %v1195 = vmax.f32 %v1190, %v1194
        %v1196 = vsel %vm817, %v1187, -inf
        %v1197 = vmax.f32 %v1191, %v1196
        %v1198 = vsel %vm817, %v1188, -inf
        %v1199 = vmax.f32 %v1192, %v1198
        %v1200 = vsel %vm817, %v1189, -inf
        %v1201 = vmax.f32 %v1193, %v1200
        %v1202 = vmax.f32 %v1195, %v1197
        %v1203 = vmax.f32 %v1199, %v1201
        %v1204 = vmax.f32 %v1202, %v1203
        %v1205 = vrot.slane %v1204, 4
        %v1206 = vmax.f32 %v1204, %v1205
        %v1207 = vrot.slane %v1206, 2
        %v1208 = vmax.f32 %v1206, %v1207
        %v1209 = vrot.slane %v1208, 1
        %v1210 = vmax.f32 %v1208, %v1209
        %vm1211 = vcmp.eq.f32.partialorder %v1182, %v1210
        %vm1212 = vcmp.eq.f32.partialorder %v1183, %v1210
        %vm1213 = vcmp.eq.f32.partialorder %v1184, %v1210
        %vm1214 = vcmp.eq.f32.partialorder %v1185, %v1210
        %vm1215 = vcmp.eq.f32.partialorder %v1186, %v1210
        %vm1216 = vcmp.eq.f32.partialorder %v1187, %v1210
        %vm1217 = vcmp.eq.f32.partialorder %v1188, %v1210
        %vm1218 = vcmp.eq.f32.partialorder %v1189, %v1210
        %v1219 = vsel %vm1211, %v809, 64
        %v1220 = vsel %vm1212, %v810, 64
        %v1221 = vsel %vm1213, %v811, 64
        %v1222 = vsel %vm1214, %v812, 64
        %v1223 = vsel %vm1215, %v813, 64
        %v1224 = vsel %vm1216, %v814, 64
        %v1225 = vsel %vm1217, %v815, 64
        %v1226 = vsel %vm1218, %v816, 64
        %v1227 = vsel %vm817, %v1219, 2147483647
        %v1228 = vsel %vm817, %v1220, 2147483647
        %v1229 = vsel %vm817, %v1221, 2147483647
        %v1230 = vsel %vm817, %v1222, 2147483647
        %v1231 = vsel %vm817, %v1223, 2147483647
        %vm1232 = vcmp.lt.s32.totalorder %v1227, %v1231
        %v1233 = vsel %vm1232, %v1227, %v1231
        %v1234 = vsel %vm817, %v1224, 2147483647
        %vm1235 = vcmp.lt.s32.totalorder %v1228, %v1234
        %v1236 = vsel %vm1235, %v1228, %v1234
        %v1237 = vsel %vm817, %v1225, 2147483647
        %vm1238 = vcmp.lt.s32.totalorder %v1229, %v1237
        %v1239 = vsel %vm1238, %v1229, %v1237
        %v1240 = vsel %vm817, %v1226, 2147483647
        %vm1241 = vcmp.lt.s32.totalorder %v1230, %v1240
        %v1242 = vsel %vm1241, %v1230, %v1240
        %vm1243 = vcmp.lt.s32.totalorder %v1233, %v1236
        %v1244 = vsel %vm1243, %v1233, %v1236
        %vm1245 = vcmp.lt.s32.totalorder %v1239, %v1242
        %v1246 = vsel %vm1245, %v1239, %v1242
        %vm1247 = vcmp.lt.s32.totalorder %v1244, %v1246
        %v1248 = vsel %vm1247, %v1244, %v1246
        %v1249 = vrot.slane %v1248, 4
        %vm1250 = vcmp.lt.s32.totalorder %v1248, %v1249
        %v1251 = vsel %vm1250, %v1248, %v1249
        %v1252 = vrot.slane %v1251, 2
        %vm1253 = vcmp.lt.s32.totalorder %v1251, %v1252
        %v1254 = vsel %vm1253, %v1251, %v1252
        %v1255 = vrot.slane %v1254, 1
        %vm1256 = vcmp.lt.s32.totalorder %v1254, %v1255
        %v1257 = vsel %vm1256, %v1254, %v1255
        %vm1258 = vcmp.eq.s32.totalorder %v809, %v1257
        %vm1259 = vcmp.eq.s32.totalorder %v810, %v1257
        %vm1260 = vcmp.eq.s32.totalorder %v811, %v1257
        %vm1261 = vcmp.eq.s32.totalorder %v812, %v1257
        %vm1262 = vcmp.eq.s32.totalorder %v813, %v1257
        %vm1263 = vcmp.eq.s32.totalorder %v814, %v1257
        %vm1264 = vcmp.eq.s32.totalorder %v815, %v1257
        %vm1265 = vcmp.eq.s32.totalorder %v816, %v1257
        %v1266 = vsel %vm1258, 1, 0
        %v1267 = vsel %vm1259, 1, 0
        %v1268 = vsel %vm1260, 1, 0
        %v1269 = vsel %vm1261, 1, 0
        %v1270 = vsel %vm1262, 1, 0
        %v1271 = vsel %vm1263, 1, 0
        %v1272 = vsel %vm1264, 1, 0
        %v1273 = vsel %vm1265, 1, 0
        %v1274 = vcvt.s32.f32 %v1266
        %v1275 = vcvt.s32.f32 %v1267
        %v1276 = vcvt.s32.f32 %v1268
        %v1277 = vcvt.s32.f32 %v1269
        %v1278 = vcvt.s32.f32 %v1270
        %v1279 = vcvt.s32.f32 %v1271
        %v1280 = vcvt.s32.f32 %v1272
        %v1281 = vcvt.s32.f32 %v1273
        %v1282 = vmul.f32 %v1274, %v1210
        %v1283 = vmul.f32 %v1275, %v1210
        %v1284 = vmul.f32 %v1276, %v1210
        %v1285 = vmul.f32 %v1277, %v1210
        %v1286 = vmul.f32 %v1278, %v1210
        %v1287 = vmul.f32 %v1279, %v1210
        %v1288 = vmul.f32 %v1280, %v1210
        %v1289 = vmul.f32 %v1281, %v1210
        %v1290 = vadd.f32 %v1166, %v1282
        %v1291 = vadd.f32 %v1167, %v1283
        %v1292 = vadd.f32 %v1168, %v1284
        %v1293 = vadd.f32 %v1169, %v1285
        %v1294 = vadd.f32 %v1170, %v1286
        %v1295 = vadd.f32 %v1171, %v1287
        %v1296 = vadd.f32 %v1172, %v1288
        %v1297 = vadd.f32 %v1173, %v1289
        %v1298 = vld [vmem:[%s266] sm:$0x1f]
        %v1299 = vpack.c.bf16 %v1298, %v1298
        %v1300 = vpack.c.bf16 %v1291, %v1290
        %v1301 = vpack.c.bf16 %v1293, %v1292
        %v1302 = vpack.c.bf16 %v1295, %v1294
        %v1303 = vpack.c.bf16 %v1297, %v1296
        %v1305 = vsel %vm817, %v1299, 0
        %1307 = vmatpush.bf16.msra.mxu0 0
        %1308 = vmatpush.bf16.msra.mxu0 0
        %1309 = vmatpush.bf16.msra.mxu0 0
        %1310 = vmatpush.bf16.msra.mxu0 0
        %1311 = vmatpush.bf16.msra.mxu0 %v1303
        %1312 = vmatpush.bf16.msra.mxu0 %v1302
        %1313 = vmatpush.bf16.msra.mxu0 %v1301
        %1314 = vmatpush.bf16.msra.mxu0 %v1300
        %1315 = vmatmul.bf16.gmra.mxu0 %v1305
        %v1316 = vpop.f32.mrf.mxu0
        %v1317 = vadd.f32 0.0, %v1316
        %v1318 = vpop.f32.mrf.mxu0
        %1319 = vdwg.mxu0
        %v1320 = vld [vmem:[%s4] sm:$0xff]
        %v1321 = vld [vmem:[%s4 + $0x8] sm:$0xff]
        %v1322 = vld [vmem:[%s4 + $0x10] sm:$0xff]
        %v1323 = vld [vmem:[%s4 + $0x18] sm:$0xff]
        %v1324 = vld [vmem:[%s5] sm:$0xf]
        %v1325 = vpack.c.bf16 %v1317, %v1317
        %vm1326 = vcmask 64512
        %v1328 = vsel %vm1326, %v1325, 0
        %vm1330 = vcmask 1043456
        %v1332 = vsel %vm1330, %v1324, 0
        %1334 = vmatpush.bf16.msra.mxu0 0
        %1335 = vmatpush.bf16.msra.mxu0 0
        %1336 = vmatpush.bf16.msra.mxu0 0
        %1337 = vmatpush.bf16.msra.mxu0 0
        %1338 = vmatpush.bf16.msra.mxu0 0
        %1339 = vmatpush.bf16.msra.mxu0 0
        %1340 = vmatpush.bf16.msra.mxu0 0
        %1341 = vmatpush.bf16.msra.mxu0 %v1332
        %1342 = vmatmul.bf16.gmra.mxu0 %v1328
        %v1343 = vpop.f32.mrf.mxu0
        %v1344 = vadd.f32 0.0, %v1343
        %v1345 = vpop.f32.mrf.mxu0
        %1346 = vdwg.mxu0
        %1348 = vrot.lane.b32.xlu0 %v1325, 120
        %v1349 = vpop.permute.xlu0 %1348
        %v1351 = vsel %vm1326, %v1349, 0
        %1353 = vmatpush.bf16.msra.mxu0 0
        %1354 = vmatpush.bf16.msra.mxu0 0
        %1355 = vmatpush.bf16.msra.mxu0 0
        %1356 = vmatpush.bf16.msra.mxu0 0
        %1357 = vmatpush.bf16.msra.mxu0 0
        %1358 = vmatpush.bf16.msra.mxu0 0
        %1359 = vmatpush.bf16.msra.mxu0 0
        %1360 = vmatpush.bf16.msra.mxu0 %v1332
        %1361 = vmatmul.bf16.gmra.mxu0 %v1351
        %v1362 = vpop.f32.mrf.mxu0
        %v1363 = vadd.f32 0.0, %v1362
        %v1364 = vpop.f32.mrf.mxu0
        %1365 = vdwg.mxu0
        %1366 = vrot.lane.b32.xlu0 %v1325, 112
        %v1367 = vpop.permute.xlu0 %1366
        %v1369 = vsel %vm1326, %v1367, 0
        %1371 = vmatpush.bf16.msra.mxu0 0
        %1372 = vmatpush.bf16.msra.mxu0 0
        %1373 = vmatpush.bf16.msra.mxu0 0
        %1374 = vmatpush.bf16.msra.mxu0 0
        %1375 = vmatpush.bf16.msra.mxu0 0
        %1376 = vmatpush.bf16.msra.mxu0 0
        %1377 = vmatpush.bf16.msra.mxu0 0
        %1378 = vmatpush.bf16.msra.mxu0 %v1332
        %1379 = vmatmul.bf16.gmra.mxu0 %v1369
        %v1380 = vpop.f32.mrf.mxu0
        %v1381 = vadd.f32 0.0, %v1380
        %v1382 = vpop.f32.mrf.mxu0
        %1383 = vdwg.mxu0
        %1384 = vrot.lane.b32.xlu0 %v1325, 104
        %v1385 = vpop.permute.xlu0 %1384
        %v1387 = vsel %vm1326, %v1385, 0
        %1389 = vmatpush.bf16.msra.mxu0 0
        %1390 = vmatpush.bf16.msra.mxu0 0
        %1391 = vmatpush.bf16.msra.mxu0 0
        %1392 = vmatpush.bf16.msra.mxu0 0
        %1393 = vmatpush.bf16.msra.mxu0 0
        %1394 = vmatpush.bf16.msra.mxu0 0
        %1395 = vmatpush.bf16.msra.mxu0 0
        %1396 = vmatpush.bf16.msra.mxu0 %v1332
        %1397 = vmatmul.bf16.gmra.mxu0 %v1387
        %v1398 = vpop.f32.mrf.mxu0
        %v1399 = vadd.f32 0.0, %v1398
        %v1400 = vpop.f32.mrf.mxu0
        %1401 = vdwg.mxu0
        %1402 = vrot.lane.b32.xlu0 %v1325, 96
        %v1403 = vpop.permute.xlu0 %1402
        %v1405 = vsel %vm1326, %v1403, 0
        %1407 = vmatpush.bf16.msra.mxu0 0
        %1408 = vmatpush.bf16.msra.mxu0 0
        %1409 = vmatpush.bf16.msra.mxu0 0
        %1410 = vmatpush.bf16.msra.mxu0 0
        %1411 = vmatpush.bf16.msra.mxu0 0
        %1412 = vmatpush.bf16.msra.mxu0 0
        %1413 = vmatpush.bf16.msra.mxu0 0
        %1414 = vmatpush.bf16.msra.mxu0 %v1332
        %1415 = vmatmul.bf16.gmra.mxu0 %v1405
        %v1416 = vpop.f32.mrf.mxu0
        %v1417 = vadd.f32 0.0, %v1416
        %v1418 = vpop.f32.mrf.mxu0
        %1419 = vdwg.mxu0
        %1420 = vrot.lane.b32.xlu0 %v1325, 88
        %v1421 = vpop.permute.xlu0 %1420
        %v1423 = vsel %vm1326, %v1421, 0
        %1425 = vmatpush.bf16.msra.mxu0 0
        %1426 = vmatpush.bf16.msra.mxu0 0
        %1427 = vmatpush.bf16.msra.mxu0 0
        %1428 = vmatpush.bf16.msra.mxu0 0
        %1429 = vmatpush.bf16.msra.mxu0 0
        %1430 = vmatpush.bf16.msra.mxu0 0
        %1431 = vmatpush.bf16.msra.mxu0 0
        %1432 = vmatpush.bf16.msra.mxu0 %v1332
        %1433 = vmatmul.bf16.gmra.mxu0 %v1423
        %v1434 = vpop.f32.mrf.mxu0
        %v1435 = vadd.f32 0.0, %v1434
        %v1436 = vpop.f32.mrf.mxu0
        %1437 = vdwg.mxu0
        %1438 = vrot.lane.b32.xlu0 %v1325, 80
        %v1439 = vpop.permute.xlu0 %1438
        %v1441 = vsel %vm1326, %v1439, 0
        %1443 = vmatpush.bf16.msra.mxu0 0
        %1444 = vmatpush.bf16.msra.mxu0 0
        %1445 = vmatpush.bf16.msra.mxu0 0
        %1446 = vmatpush.bf16.msra.mxu0 0
        %1447 = vmatpush.bf16.msra.mxu0 0
        %1448 = vmatpush.bf16.msra.mxu0 0
        %1449 = vmatpush.bf16.msra.mxu0 0
        %1450 = vmatpush.bf16.msra.mxu0 %v1332
        %1451 = vmatmul.bf16.gmra.mxu0 %v1441
        %v1452 = vpop.f32.mrf.mxu0
        %v1453 = vadd.f32 0.0, %v1452
        %v1454 = vpop.f32.mrf.mxu0
        %1455 = vdwg.mxu0
        %1456 = vrot.lane.b32.xlu0 %v1325, 72
        %v1457 = vpop.permute.xlu0 %1456
        %v1459 = vsel %vm1326, %v1457, 0
        %1461 = vmatpush.bf16.msra.mxu0 0
        %1462 = vmatpush.bf16.msra.mxu0 0
        %1463 = vmatpush.bf16.msra.mxu0 0
        %1464 = vmatpush.bf16.msra.mxu0 0
        %1465 = vmatpush.bf16.msra.mxu0 0
        %1466 = vmatpush.bf16.msra.mxu0 0
        %1467 = vmatpush.bf16.msra.mxu0 0
        %1468 = vmatpush.bf16.msra.mxu0 %v1332
        %1469 = vmatmul.bf16.gmra.mxu0 %v1459
        %v1470 = vpop.f32.mrf.mxu0
        %v1471 = vadd.f32 0.0, %v1470
        %v1472 = vpop.f32.mrf.mxu0
        %1473 = vdwg.mxu0
        %1475 = vset.pattern.permute.xlu0 0
        %1476 = vperm.xlu0 %1475, %v1320
        %v1477 = vpop.permute.xlu0 %1476
        %1480 = vset.pattern.permute.xlu0 0
        %1481 = vperm.xlu0 %1480, %v1321
        %v1482 = vpop.permute.xlu0 %1481
        %1485 = vset.pattern.permute.xlu0 0
        %1486 = vperm.xlu0 %1485, %v1322
        %v1487 = vpop.permute.xlu0 %1486
        %1490 = vset.pattern.permute.xlu0 0
        %1491 = vperm.xlu0 %1490, %v1323
        %v1492 = vpop.permute.xlu0 %1491
        %v1494 = vperm.slane %v1344, 0
        %v1495 = vmul.f32 %v1477, %v1494
        %v1496 = vmul.f32 %v1482, %v1494
        %v1497 = vmul.f32 %v1487, %v1494
        %v1498 = vmul.f32 %v1492, %v1494
        %v1499 = vadd.f32 %v1495, 0.0
        %v1500 = vadd.f32 %v1496, 0.0
        %v1501 = vadd.f32 %v1497, 0.0
        %v1502 = vadd.f32 %v1498, 0.0
        %1503 = vset.pattern.permute.xlu0 1
        %1504 = vperm.xlu0 %1503, %v1320
        %v1505 = vpop.permute.xlu0 %1504
        %1507 = vset.pattern.permute.xlu0 1
        %1508 = vperm.xlu0 %1507, %v1321
        %v1509 = vpop.permute.xlu0 %1508
        %1511 = vset.pattern.permute.xlu0 1
        %1512 = vperm.xlu0 %1511, %v1322
        %v1513 = vpop.permute.xlu0 %1512
        %1515 = vset.pattern.permute.xlu0 1
        %1516 = vperm.xlu0 %1515, %v1323
        %v1517 = vpop.permute.xlu0 %1516
        %v1519 = vperm.slane %v1363, 0
        %v1520 = vmul.f32 %v1505, %v1519
        %v1521 = vmul.f32 %v1509, %v1519
        %v1522 = vmul.f32 %v1513, %v1519
        %v1523 = vmul.f32 %v1517, %v1519
        %v1524 = vadd.f32 %v1499, %v1520
        %v1525 = vadd.f32 %v1500, %v1521
        %v1526 = vadd.f32 %v1501, %v1522
        %v1527 = vadd.f32 %v1502, %v1523
        %1528 = vset.pattern.permute.xlu0 2
        %1529 = vperm.xlu0 %1528, %v1320
        %v1530 = vpop.permute.xlu0 %1529
        %1532 = vset.pattern.permute.xlu0 2
        %1533 = vperm.xlu0 %1532, %v1321
        %v1534 = vpop.permute.xlu0 %1533
        %1536 = vset.pattern.permute.xlu0 2
        %1537 = vperm.xlu0 %1536, %v1322
        %v1538 = vpop.permute.xlu0 %1537
        %1540 = vset.pattern.permute.xlu0 2
        %1541 = vperm.xlu0 %1540, %v1323
        %v1542 = vpop.permute.xlu0 %1541
        %v1544 = vperm.slane %v1381, 0
        %v1545 = vmul.f32 %v1530, %v1544
        %v1546 = vmul.f32 %v1534, %v1544
        %v1547 = vmul.f32 %v1538, %v1544
        %v1548 = vmul.f32 %v1542, %v1544
        %v1549 = vadd.f32 %v1524, %v1545
        %v1550 = vadd.f32 %v1525, %v1546
        %v1551 = vadd.f32 %v1526, %v1547
        %v1552 = vadd.f32 %v1527, %v1548
        %1553 = vset.pattern.permute.xlu0 3
        %1554 = vperm.xlu0 %1553, %v1320
        %v1555 = vpop.permute.xlu0 %1554
        %1557 = vset.pattern.permute.xlu0 3
        %1558 = vperm.xlu0 %1557, %v1321
        %v1559 = vpop.permute.xlu0 %1558
        %1561 = vset.pattern.permute.xlu0 3
        %1562 = vperm.xlu0 %1561, %v1322
        %v1563 = vpop.permute.xlu0 %1562
        %1565 = vset.pattern.permute.xlu0 3
        %1566 = vperm.xlu0 %1565, %v1323
        %v1567 = vpop.permute.xlu0 %1566
        %v1569 = vperm.slane %v1399, 0
        %v1570 = vmul.f32 %v1555, %v1569
        %v1571 = vmul.f32 %v1559, %v1569
        %v1572 = vmul.f32 %v1563, %v1569
        %v1573 = vmul.f32 %v1567, %v1569
        %v1574 = vadd.f32 %v1549, %v1570
        %v1575 = vadd.f32 %v1550, %v1571
        %v1576 = vadd.f32 %v1551, %v1572
        %v1577 = vadd.f32 %v1552, %v1573
        %1578 = vset.pattern.permute.xlu0 4
        %1579 = vperm.xlu0 %1578, %v1320
        %v1580 = vpop.permute.xlu0 %1579
        %1582 = vset.pattern.permute.xlu0 4
        %1583 = vperm.xlu0 %1582, %v1321
        %v1584 = vpop.permute.xlu0 %1583
        %1586 = vset.pattern.permute.xlu0 4
        %1587 = vperm.xlu0 %1586, %v1322
        %v1588 = vpop.permute.xlu0 %1587
        %1590 = vset.pattern.permute.xlu0 4
        %1591 = vperm.xlu0 %1590, %v1323
        %v1592 = vpop.permute.xlu0 %1591
        %v1594 = vperm.slane %v1417, 0
        %v1595 = vmul.f32 %v1580, %v1594
        %v1596 = vmul.f32 %v1584, %v1594
        %v1597 = vmul.f32 %v1588, %v1594
        %v1598 = vmul.f32 %v1592, %v1594
        %v1599 = vadd.f32 %v1574, %v1595
        %v1600 = vadd.f32 %v1575, %v1596
        %v1601 = vadd.f32 %v1576, %v1597
        %v1602 = vadd.f32 %v1577, %v1598
        %1603 = vset.pattern.permute.xlu0 5
        %1604 = vperm.xlu0 %1603, %v1320
        %v1605 = vpop.permute.xlu0 %1604
        %1607 = vset.pattern.permute.xlu0 5
        %1608 = vperm.xlu0 %1607, %v1321
        %v1609 = vpop.permute.xlu0 %1608
        %1611 = vset.pattern.permute.xlu0 5
        %1612 = vperm.xlu0 %1611, %v1322
        %v1613 = vpop.permute.xlu0 %1612
        %1615 = vset.pattern.permute.xlu0 5
        %1616 = vperm.xlu0 %1615, %v1323
        %v1617 = vpop.permute.xlu0 %1616
        %v1619 = vperm.slane %v1435, 0
        %v1620 = vmul.f32 %v1605, %v1619
        %v1621 = vmul.f32 %v1609, %v1619
        %v1622 = vmul.f32 %v1613, %v1619
        %v1623 = vmul.f32 %v1617, %v1619
        %v1624 = vadd.f32 %v1599, %v1620
        %v1625 = vadd.f32 %v1600, %v1621
        %v1626 = vadd.f32 %v1601, %v1622
        %v1627 = vadd.f32 %v1602, %v1623
        %1628 = vset.pattern.permute.xlu0 6
        %1629 = vperm.xlu0 %1628, %v1320
        %v1630 = vpop.permute.xlu0 %1629
        %1632 = vset.pattern.permute.xlu0 6
        %1633 = vperm.xlu0 %1632, %v1321
        %v1634 = vpop.permute.xlu0 %1633
        %1636 = vset.pattern.permute.xlu0 6
        %1637 = vperm.xlu0 %1636, %v1322
        %v1638 = vpop.permute.xlu0 %1637
        %1640 = vset.pattern.permute.xlu0 6
        %1641 = vperm.xlu0 %1640, %v1323
        %v1642 = vpop.permute.xlu0 %1641
        %v1644 = vperm.slane %v1453, 0
        %v1645 = vmul.f32 %v1630, %v1644
        %v1646 = vmul.f32 %v1634, %v1644
        %v1647 = vmul.f32 %v1638, %v1644
        %v1648 = vmul.f32 %v1642, %v1644
        %v1649 = vadd.f32 %v1624, %v1645
        %v1650 = vadd.f32 %v1625, %v1646
        %v1651 = vadd.f32 %v1626, %v1647
        %v1652 = vadd.f32 %v1627, %v1648
        %1653 = vset.pattern.permute.xlu0 7
        %1654 = vperm.xlu0 %1653, %v1320
        %v1655 = vpop.permute.xlu0 %1654
        %1657 = vset.pattern.permute.xlu0 7
        %1658 = vperm.xlu0 %1657, %v1321
        %v1659 = vpop.permute.xlu0 %1658
        %1661 = vset.pattern.permute.xlu0 7
        %1662 = vperm.xlu0 %1661, %v1322
        %v1663 = vpop.permute.xlu0 %1662
        %1665 = vset.pattern.permute.xlu0 7
        %1666 = vperm.xlu0 %1665, %v1323
        %v1667 = vpop.permute.xlu0 %1666
        %v1669 = vperm.slane %v1471, 0
        %v1670 = vmul.f32 %v1655, %v1669
        %v1671 = vmul.f32 %v1659, %v1669
        %v1672 = vmul.f32 %v1663, %v1669
        %v1673 = vmul.f32 %v1667, %v1669
        %v1674 = vadd.f32 %v1649, %v1670
        %v1675 = vadd.f32 %v1650, %v1671
        %v1676 = vadd.f32 %v1651, %v1672
        %v1677 = vadd.f32 %v1652, %v1673
        %1678 = vst.msk [vmem:[%s257] sm:$0xff] %vm458, %v1674
        %1679 = vst.msk [vmem:[%s257 + $0x8] sm:$0xff] %vm458, %v1675
        %1680 = vst.msk [vmem:[%s257 + $0x10] sm:$0xff] %vm458, %v1676
        %1681 = vst.msk [vmem:[%s257 + $0x18] sm:$0xff] %vm458, %v1677
        %v1682 = vperm.slane %v1344, 1
        %v1683 = vmul.f32 %v1477, %v1682
        %v1684 = vmul.f32 %v1482, %v1682
        %v1685 = vmul.f32 %v1487, %v1682
        %v1686 = vmul.f32 %v1492, %v1682
        %v1687 = vadd.f32 %v1683, 0.0
        %v1688 = vadd.f32 %v1684, 0.0
        %v1689 = vadd.f32 %v1685, 0.0
        %v1690 = vadd.f32 %v1686, 0.0
        %v1691 = vperm.slane %v1363, 1
        %v1692 = vmul.f32 %v1505, %v1691
        %v1693 = vmul.f32 %v1509, %v1691
        %v1694 = vmul.f32 %v1513, %v1691
        %v1695 = vmul.f32 %v1517, %v1691
        %v1696 = vadd.f32 %v1687, %v1692
        %v1697 = vadd.f32 %v1688, %v1693
        %v1698 = vadd.f32 %v1689, %v1694
        %v1699 = vadd.f32 %v1690, %v1695
        %v1700 = vperm.slane %v1381, 1
        %v1701 = vmul.f32 %v1530, %v1700
        %v1702 = vmul.f32 %v1534, %v1700
        %v1703 = vmul.f32 %v1538, %v1700
        %v1704 = vmul.f32 %v1542, %v1700
        %v1705 = vadd.f32 %v1696, %v1701
        %v1706 = vadd.f32 %v1697, %v1702
        %v1707 = vadd.f32 %v1698, %v1703
        %v1708 = vadd.f32 %v1699, %v1704
        %v1709 = vperm.slane %v1399, 1
        %v1710 = vmul.f32 %v1555, %v1709
        %v1711 = vmul.f32 %v1559, %v1709
        %v1712 = vmul.f32 %v1563, %v1709
        %v1713 = vmul.f32 %v1567, %v1709
        %v1714 = vadd.f32 %v1705, %v1710
        %v1715 = vadd.f32 %v1706, %v1711
        %v1716 = vadd.f32 %v1707, %v1712
        %v1717 = vadd.f32 %v1708, %v1713
        %v1718 = vperm.slane %v1417, 1
        %v1719 = vmul.f32 %v1580, %v1718
        %v1720 = vmul.f32 %v1584, %v1718
        %v1721 = vmul.f32 %v1588, %v1718
        %v1722 = vmul.f32 %v1592, %v1718
        %v1723 = vadd.f32 %v1714, %v1719
        %v1724 = vadd.f32 %v1715, %v1720
        %v1725 = vadd.f32 %v1716, %v1721
        %v1726 = vadd.f32 %v1717, %v1722
        %v1727 = vperm.slane %v1435, 1
        %v1728 = vmul.f32 %v1605, %v1727
        %v1729 = vmul.f32 %v1609, %v1727
        %v1730 = vmul.f32 %v1613, %v1727
        %v1731 = vmul.f32 %v1617, %v1727
        %v1732 = vadd.f32 %v1723, %v1728
        %v1733 = vadd.f32 %v1724, %v1729
        %v1734 = vadd.f32 %v1725, %v1730
        %v1735 = vadd.f32 %v1726, %v1731
        %v1736 = vperm.slane %v1453, 1
        %v1737 = vmul.f32 %v1630, %v1736
        %v1738 = vmul.f32 %v1634, %v1736
        %v1739 = vmul.f32 %v1638, %v1736
        %v1740 = vmul.f32 %v1642, %v1736
        %v1741 = vadd.f32 %v1732, %v1737
        %v1742 = vadd.f32 %v1733, %v1738
        %v1743 = vadd.f32 %v1734, %v1739
        %v1744 = vadd.f32 %v1735, %v1740
        %v1745 = vperm.slane %v1471, 1
        %v1746 = vmul.f32 %v1655, %v1745
        %v1747 = vmul.f32 %v1659, %v1745
        %v1748 = vmul.f32 %v1663, %v1745
        %v1749 = vmul.f32 %v1667, %v1745
        %v1750 = vadd.f32 %v1741, %v1746
        %v1751 = vadd.f32 %v1742, %v1747
        %v1752 = vadd.f32 %v1743, %v1748
        %v1753 = vadd.f32 %v1744, %v1749
        %s1754 = scalar_lea.vmem %s257, 32 [#allocation2]
        %1755 = vst.msk [vmem:[%s1754] sm:$0xff] %vm458, %v1750
        %1756 = vst.msk [vmem:[%s1754 + $0x8] sm:$0xff] %vm458, %v1751
        %1757 = vst.msk [vmem:[%s1754 + $0x10] sm:$0xff] %vm458, %v1752
        %1758 = vst.msk [vmem:[%s1754 + $0x18] sm:$0xff] %vm458, %v1753
        %v1759 = vperm.slane %v1344, 2
        %v1760 = vmul.f32 %v1477, %v1759
        %v1761 = vmul.f32 %v1482, %v1759
        %v1762 = vmul.f32 %v1487, %v1759
        %v1763 = vmul.f32 %v1492, %v1759
        %v1764 = vadd.f32 %v1760, 0.0
        %v1765 = vadd.f32 %v1761, 0.0
        %v1766 = vadd.f32 %v1762, 0.0
        %v1767 = vadd.f32 %v1763, 0.0
        %v1768 = vperm.slane %v1363, 2
        %v1769 = vmul.f32 %v1505, %v1768
        %v1770 = vmul.f32 %v1509, %v1768
        %v1771 = vmul.f32 %v1513, %v1768
        %v1772 = vmul.f32 %v1517, %v1768
        %v1773 = vadd.f32 %v1764, %v1769
        %v1774 = vadd.f32 %v1765, %v1770
        %v1775 = vadd.f32 %v1766, %v1771
        %v1776 = vadd.f32 %v1767, %v1772
        %v1777 = vperm.slane %v1381, 2
        %v1778 = vmul.f32 %v1530, %v1777
        %v1779 = vmul.f32 %v1534, %v1777
        %v1780 = vmul.f32 %v1538, %v1777
        %v1781 = vmul.f32 %v1542, %v1777
        %v1782 = vadd.f32 %v1773, %v1778
        %v1783 = vadd.f32 %v1774, %v1779
        %v1784 = vadd.f32 %v1775, %v1780
        %v1785 = vadd.f32 %v1776, %v1781
        %v1786 = vperm.slane %v1399, 2
        %v1787 = vmul.f32 %v1555, %v1786
        %v1788 = vmul.f32 %v1559, %v1786
        %v1789 = vmul.f32 %v1563, %v1786
        %v1790 = vmul.f32 %v1567, %v1786
        %v1791 = vadd.f32 %v1782, %v1787
        %v1792 = vadd.f32 %v1783, %v1788
        %v1793 = vadd.f32 %v1784, %v1789
        %v1794 = vadd.f32 %v1785, %v1790
        %v1795 = vperm.slane %v1417, 2
        %v1796 = vmul.f32 %v1580, %v1795
        %v1797 = vmul.f32 %v1584, %v1795
        %v1798 = vmul.f32 %v1588, %v1795
        %v1799 = vmul.f32 %v1592, %v1795
        %v1800 = vadd.f32 %v1791, %v1796
        %v1801 = vadd.f32 %v1792, %v1797
        %v1802 = vadd.f32 %v1793, %v1798
        %v1803 = vadd.f32 %v1794, %v1799
        %v1804 = vperm.slane %v1435, 2
        %v1805 = vmul.f32 %v1605, %v1804
        %v1806 = vmul.f32 %v1609, %v1804
        %v1807 = vmul.f32 %v1613, %v1804
        %v1808 = vmul.f32 %v1617, %v1804
        %v1809 = vadd.f32 %v1800, %v1805
        %v1810 = vadd.f32 %v1801, %v1806
        %v1811 = vadd.f32 %v1802, %v1807
        %v1812 = vadd.f32 %v1803, %v1808
        %v1813 = vperm.slane %v1453, 2
        %v1814 = vmul.f32 %v1630, %v1813
        %v1815 = vmul.f32 %v1634, %v1813
        %v1816 = vmul.f32 %v1638, %v1813
        %v1817 = vmul.f32 %v1642, %v1813
        %v1818 = vadd.f32 %v1809, %v1814
        %v1819 = vadd.f32 %v1810, %v1815
        %v1820 = vadd.f32 %v1811, %v1816
        %v1821 = vadd.f32 %v1812, %v1817
        %v1822 = vperm.slane %v1471, 2
        %v1823 = vmul.f32 %v1655, %v1822
        %v1824 = vmul.f32 %v1659, %v1822
        %v1825 = vmul.f32 %v1663, %v1822
        %v1826 = vmul.f32 %v1667, %v1822
        %v1827 = vadd.f32 %v1818, %v1823
        %v1828 = vadd.f32 %v1819, %v1824
        %v1829 = vadd.f32 %v1820, %v1825
        %v1830 = vadd.f32 %v1821, %v1826
        %s1831 = scalar_lea.vmem %s257, 64 [#allocation2]
        %1832 = vst.msk [vmem:[%s1831] sm:$0xff] %vm458, %v1827
        %1833 = vst.msk [vmem:[%s1831 + $0x8] sm:$0xff] %vm458, %v1828
        %1834 = vst.msk [vmem:[%s1831 + $0x10] sm:$0xff] %vm458, %v1829
        %1835 = vst.msk [vmem:[%s1831 + $0x18] sm:$0xff] %vm458, %v1830
        %v1836 = vperm.slane %v1344, 3
        %v1837 = vmul.f32 %v1477, %v1836
        %v1838 = vmul.f32 %v1482, %v1836
        %v1839 = vmul.f32 %v1487, %v1836
        %v1840 = vmul.f32 %v1492, %v1836
        %v1841 = vadd.f32 %v1837, 0.0
        %v1842 = vadd.f32 %v1838, 0.0
        %v1843 = vadd.f32 %v1839, 0.0
        %v1844 = vadd.f32 %v1840, 0.0
        %v1845 = vperm.slane %v1363, 3
        %v1846 = vmul.f32 %v1505, %v1845
        %v1847 = vmul.f32 %v1509, %v1845
        %v1848 = vmul.f32 %v1513, %v1845
        %v1849 = vmul.f32 %v1517, %v1845
        %v1850 = vadd.f32 %v1841, %v1846
        %v1851 = vadd.f32 %v1842, %v1847
        %v1852 = vadd.f32 %v1843, %v1848
        %v1853 = vadd.f32 %v1844, %v1849
        %v1854 = vperm.slane %v1381, 3
        %v1855 = vmul.f32 %v1530, %v1854
        %v1856 = vmul.f32 %v1534, %v1854
        %v1857 = vmul.f32 %v1538, %v1854
        %v1858 = vmul.f32 %v1542, %v1854
        %v1859 = vadd.f32 %v1850, %v1855
        %v1860 = vadd.f32 %v1851, %v1856
        %v1861 = vadd.f32 %v1852, %v1857
        %v1862 = vadd.f32 %v1853, %v1858
        %v1863 = vperm.slane %v1399, 3
        %v1864 = vmul.f32 %v1555, %v1863
        %v1865 = vmul.f32 %v1559, %v1863
        %v1866 = vmul.f32 %v1563, %v1863
        %v1867 = vmul.f32 %v1567, %v1863
        %v1868 = vadd.f32 %v1859, %v1864
        %v1869 = vadd.f32 %v1860, %v1865
        %v1870 = vadd.f32 %v1861, %v1866
        %v1871 = vadd.f32 %v1862, %v1867
        %v1872 = vperm.slane %v1417, 3
        %v1873 = vmul.f32 %v1580, %v1872
        %v1874 = vmul.f32 %v1584, %v1872
        %v1875 = vmul.f32 %v1588, %v1872
        %v1876 = vmul.f32 %v1592, %v1872
        %v1877 = vadd.f32 %v1868, %v1873
        %v1878 = vadd.f32 %v1869, %v1874
        %v1879 = vadd.f32 %v1870, %v1875
        %v1880 = vadd.f32 %v1871, %v1876
        %v1881 = vperm.slane %v1435, 3
        %v1882 = vmul.f32 %v1605, %v1881
        %v1883 = vmul.f32 %v1609, %v1881
        %v1884 = vmul.f32 %v1613, %v1881
        %v1885 = vmul.f32 %v1617, %v1881
        %v1886 = vadd.f32 %v1877, %v1882
        %v1887 = vadd.f32 %v1878, %v1883
        %v1888 = vadd.f32 %v1879, %v1884
        %v1889 = vadd.f32 %v1880, %v1885
        %v1890 = vperm.slane %v1453, 3
        %v1891 = vmul.f32 %v1630, %v1890
        %v1892 = vmul.f32 %v1634, %v1890
        %v1893 = vmul.f32 %v1638, %v1890
        %v1894 = vmul.f32 %v1642, %v1890
        %v1895 = vadd.f32 %v1886, %v1891
        %v1896 = vadd.f32 %v1887, %v1892
        %v1897 = vadd.f32 %v1888, %v1893
        %v1898 = vadd.f32 %v1889, %v1894
        %v1899 = vperm.slane %v1471, 3
        %v1900 = vmul.f32 %v1655, %v1899
        %v1901 = vmul.f32 %v1659, %v1899
        %v1902 = vmul.f32 %v1663, %v1899
        %v1903 = vmul.f32 %v1667, %v1899
        %v1904 = vadd.f32 %v1895, %v1900
        %v1905 = vadd.f32 %v1896, %v1901
        %v1906 = vadd.f32 %v1897, %v1902
        %v1907 = vadd.f32 %v1898, %v1903
        %s1908 = scalar_lea.vmem %s257, 96 [#allocation2]
        %1909 = vst.msk [vmem:[%s1908] sm:$0xff] %vm458, %v1904
        %1910 = vst.msk [vmem:[%s1908 + $0x8] sm:$0xff] %vm458, %v1905
        %1911 = vst.msk [vmem:[%s1908 + $0x10] sm:$0xff] %vm458, %v1906
        %1912 = vst.msk [vmem:[%s1908 + $0x18] sm:$0xff] %vm458, %v1907
        %v1913 = vperm.slane %v1344, 4
        %v1914 = vmul.f32 %v1477, %v1913
        %v1915 = vmul.f32 %v1482, %v1913
        %v1916 = vmul.f32 %v1487, %v1913
        %v1917 = vmul.f32 %v1492, %v1913
        %v1918 = vadd.f32 %v1914, 0.0
        %v1919 = vadd.f32 %v1915, 0.0
        %v1920 = vadd.f32 %v1916, 0.0
        %v1921 = vadd.f32 %v1917, 0.0
        %v1922 = vperm.slane %v1363, 4
        %v1923 = vmul.f32 %v1505, %v1922
        %v1924 = vmul.f32 %v1509, %v1922
        %v1925 = vmul.f32 %v1513, %v1922
        %v1926 = vmul.f32 %v1517, %v1922
        %v1927 = vadd.f32 %v1918, %v1923
        %v1928 = vadd.f32 %v1919, %v1924
        %v1929 = vadd.f32 %v1920, %v1925
        %v1930 = vadd.f32 %v1921, %v1926
        %v1931 = vperm.slane %v1381, 4
        %v1932 = vmul.f32 %v1530, %v1931
        %v1933 = vmul.f32 %v1534, %v1931
        %v1934 = vmul.f32 %v1538, %v1931
        %v1935 = vmul.f32 %v1542, %v1931
        %v1936 = vadd.f32 %v1927, %v1932
        %v1937 = vadd.f32 %v1928, %v1933
        %v1938 = vadd.f32 %v1929, %v1934
        %v1939 = vadd.f32 %v1930, %v1935
        %v1940 = vperm.slane %v1399, 4
        %v1941 = vmul.f32 %v1555, %v1940
        %v1942 = vmul.f32 %v1559, %v1940
        %v1943 = vmul.f32 %v1563, %v1940
        %v1944 = vmul.f32 %v1567, %v1940
        %v1945 = vadd.f32 %v1936, %v1941
        %v1946 = vadd.f32 %v1937, %v1942
        %v1947 = vadd.f32 %v1938, %v1943
        %v1948 = vadd.f32 %v1939, %v1944
        %v1949 = vperm.slane %v1417, 4
        %v1950 = vmul.f32 %v1580, %v1949
        %v1951 = vmul.f32 %v1584, %v1949
        %v1952 = vmul.f32 %v1588, %v1949
        %v1953 = vmul.f32 %v1592, %v1949
        %v1954 = vadd.f32 %v1945, %v1950
        %v1955 = vadd.f32 %v1946, %v1951
        %v1956 = vadd.f32 %v1947, %v1952
        %v1957 = vadd.f32 %v1948, %v1953
        %v1958 = vperm.slane %v1435, 4
        %v1959 = vmul.f32 %v1605, %v1958
        %v1960 = vmul.f32 %v1609, %v1958
        %v1961 = vmul.f32 %v1613, %v1958
        %v1962 = vmul.f32 %v1617, %v1958
        %v1963 = vadd.f32 %v1954, %v1959
        %v1964 = vadd.f32 %v1955, %v1960
        %v1965 = vadd.f32 %v1956, %v1961
        %v1966 = vadd.f32 %v1957, %v1962
        %v1967 = vperm.slane %v1453, 4
        %v1968 = vmul.f32 %v1630, %v1967
        %v1969 = vmul.f32 %v1634, %v1967
        %v1970 = vmul.f32 %v1638, %v1967
        %v1971 = vmul.f32 %v1642, %v1967
        %v1972 = vadd.f32 %v1963, %v1968
        %v1973 = vadd.f32 %v1964, %v1969
        %v1974 = vadd.f32 %v1965, %v1970
        %v1975 = vadd.f32 %v1966, %v1971
        %v1976 = vperm.slane %v1471, 4
        %v1977 = vmul.f32 %v1655, %v1976
        %v1978 = vmul.f32 %v1659, %v1976
        %v1979 = vmul.f32 %v1663, %v1976
        %v1980 = vmul.f32 %v1667, %v1976
        %v1981 = vadd.f32 %v1972, %v1977
        %v1982 = vadd.f32 %v1973, %v1978
        %v1983 = vadd.f32 %v1974, %v1979
        %v1984 = vadd.f32 %v1975, %v1980
        %s1985 = scalar_lea.vmem %s257, 128 [#allocation2]
        %1986 = vst.msk [vmem:[%s1985] sm:$0xff] %vm458, %v1981
        %1987 = vst.msk [vmem:[%s1985 + $0x8] sm:$0xff] %vm458, %v1982
        %1988 = vst.msk [vmem:[%s1985 + $0x10] sm:$0xff] %vm458, %v1983
        %1989 = vst.msk [vmem:[%s1985 + $0x18] sm:$0xff] %vm458, %v1984
        %s1990 = sand.u32 %s164, 1
        %s1991 = scalar_lea.sflag [#allocation3], %s1990
        %s1992 = sand.u32 %s164, 1
        %s1993 = smul.addr %s1992, 160
        %s1994 = scalar_lea.vmem [#allocation2], %s1993
        // Predicated region
        $region45: #{pronet_forward.1} parent=43 // pred_check
          %p1995 = pneg %p174
        $region46: #{pronet_forward.1} parent=43 // pred_check_branch
          %1997 = sbr.rel (%p1995) target = $region48
        $region47: #{pronet_forward.1} parent=43 // pred_region
          %1999 = vsyncadd %s1991, 0
          %s2000 = smul.addr %s20, 20
          %s2001 = smul.addr %s2000, 8
          %s2002 = scalar_lea.hbm %s6, %s2001
          %s2003 = sshll.u32 %s1994, 4
          %s2004 = int_to_ptr.vmem [resolvable:$true] %s2003
          %s2005 = sshll.u32 %s2002, 4
          %s2006 = int_to_ptr.hbm [resolvable:$true] %s2005
          %2011 = dma.vmem_to_hbm [thread:$0]  %s2004, 2560, %s2006, %s1991, 128, 128, 8
        $region48: #{pronet_forward.1} parent=43 // pred_fallthru
          _
      $region44: #{pronet_forward.1} parent=5 // pred_fallthru
        _
      %p2012 = scmp.le.s32.totalorder 2, %s15
      // Predicated region
      $region49: #{pronet_forward.1} parent=5 // pred_check
        %p2013 = pneg %p2012
      $region50: #{pronet_forward.1} parent=5 // pred_check_branch
        %2015 = sbr.rel (%p2013) target = $region52
      $region51: #{pronet_forward.1} parent=5 // pred_region
        %s2016 = ssub.s32 %s15, 2
        // Predicated region
        $region53: #{pronet_forward.1} parent=51 // pred_check
          %p2017 = pneg %p180
        $region54: #{pronet_forward.1} parent=51 // pred_check_branch
          %2019 = sbr.rel (%p2017) target = $region56
        $region55: #{pronet_forward.1} parent=51 // pred_region
          %s2020 = sand.u32 %s165, 1
          %s2021 = scalar_lea.sflag [#allocation3], %s2020
          %s2022 = sand.u32 %s165, 1
          %s2023 = smul.addr %s2022, 160
          %s2024 = scalar_lea.vmem [#allocation2], %s2023
          %2026 = dma.done %s2021, 2560
        $region56: #{pronet_forward.1} parent=51 // pred_fallthru
          _
      $region52: #{pronet_forward.1} parent=5 // pred_fallthru
        _
    $region6: #{pronet_forward.1} parent=1 // loop_footer
      %s19 = sadd.s32 1, %s15
    $region7: #{pronet_forward.1} parent=1 // loop_footer_branch
      %14 = sbr.rel target = $region3
    $region8: #{pronet_forward.1} parent=1 // loop_exit
      _
    %2027 = vsyncpa [#allocation3], 1
    %s2028 = scalar_lea.sflag [#allocation3], 1
    %2029 = vsyncpa %s2028, 1

</llo_original>
